<compile_context>
chip_gen: v7x
topology: tpu7x:2x2x1
jax: 0.10.0
libtpu: 0.0.40
codegen_flags: <defaults>
</compile_context>

<pallas_src>
import jax
import jax.numpy as jnp
from jax.experimental import pallas as pl
from jax.experimental.pallas import tpu as pltpu

# ---------------- configuration (small, consistent with the module) ---------
VOCAB = 50     # args.vocab_size
EMB = 16       # args.embedding_dim
MEM = 32       # args.memory_size   (LSTM hidden size per direction)
HID = 32       # args.hidden_size   (Similarity hidden size)
B = 2          # batch
T = 8          # sequence length
PAD = 0        # constants.PAD  (padding_idx -> zero embedding row)

BEFF = 2 * B          # l and r sequences stacked along batch (shared LSTM)
NTOK = T * BEFF       # total time-major (t, b) rows fed to the input matmul
H = MEM
H2 = 2 * H            # fused [fwd | bwd] hidden width
H8 = 8 * H            # fused gate width (4 gates x 2 directions x H)
HEAD_ROWS = 4 * MEM + 8   # wh_w rows + one 8-row-aligned tail for wh_b / wp


# --------------------------- fused Pallas kernel -----------------------------
def fused_kernel(lids_ref, rids_ref, tab_ref, wblk_ref, head_ref, out_ref):
    f32 = jnp.float32
    bf16 = jnp.bfloat16

    # ---- embedding + input projection + bias: ONE one-hot matmul -----------
    # Rows are time-major (row = t*BEFF + b, b ordered [l0..l_{B-1}, r0..r_{B-1}]),
    # built purely from static slices/concats (no wrapper-side transpose).
    id_cols = []
    for t in range(T):
        id_cols.append(jnp.concatenate(
            [lids_ref[:, t:t + 1], rids_ref[:, t:t + 1]], axis=0))      # (BEFF, 1)
    ids_col = jnp.concatenate(id_cols, axis=0)                          # (NTOK, 1)
    iota_v = jax.lax.broadcasted_iota(jnp.int32, (NTOK, VOCAB), 1)
    onehot = (ids_col == iota_v).astype(bf16)                           # exact 0/1 in bf16
    gx_all = jnp.dot(onehot, tab_ref[...],
                     preferred_element_type=f32)                        # (NTOK, 8H)

    # Column layout of gx_all / the recurrent matmul result (gate-major,
    # direction-minor):  col = gate*2H + dir*H + k,  gate in (i, f, g, o).
    col = jax.lax.broadcasted_iota(jnp.int32, (BEFF, H8), 1)
    fwd_cols = (col & (H2 - 1)) < H                                     # True on fwd columns

    wblk = wblk_ref[...]                                                # (2H, 8H) bf16

    # ---- fused fwd/bwd recurrence: one bf16 MXU push per time step ----------
    h = jnp.zeros((BEFF, H2), f32)        # [:, :H] = fwd h, [:, H:] = bwd h
    c = jnp.zeros((BEFF, H2), f32)
    hs = []
    for s in range(T):
        # forward direction consumes time s, backward consumes time T-1-s
        gx_f = gx_all[s * BEFF:(s + 1) * BEFF, :]
        gx_b = gx_all[(T - 1 - s) * BEFF:(T - s) * BEFF, :]
        gx_s = jnp.where(fwd_cols, gx_f, gx_b)                          # (BEFF, 8H)
        g = gx_s + jnp.dot(h.astype(bf16), wblk, preferred_element_type=f32)
        sg = jax.nn.sigmoid(g)            # full-tile EUP (i, f, o lanes used)
        th = jnp.tanh(g)                  # full-tile EUP (g lanes used)
        i_g = sg[:, 0 * H2:1 * H2]
        f_g = sg[:, 1 * H2:2 * H2]
        g_g = th[:, 2 * H2:3 * H2]
        o_g = sg[:, 3 * H2:4 * H2]
        c = f_g * c + i_g * g_g
        h = o_g * jnp.tanh(c)
        hs.append(h)   # [:, :H] = h_fwd[time s], [:, H:] = h_bwd[time T-1-s]

    # ---- Similarity head (f32 epilogue: one matmul + one lane reduce) -------
    vec_rows = []
    for t in range(T):
        hf = hs[t][:, 0:H]                # fwd hidden at time t     (BEFF, H)
        hb = hs[T - 1 - t][:, H:H2]       # bwd hidden at time t     (BEFF, H)
        l_vec = jnp.concatenate([hf[0:B, :], hb[0:B, :]], axis=1)       # (B, 2H)
        r_vec = jnp.concatenate([hf[B:BEFF, :], hb[B:BEFF, :]], axis=1)
        vec_rows.append(jnp.concatenate(
            [l_vec * r_vec, jnp.abs(l_vec - r_vec)], axis=1))           # (B, 4H)
    vec = jnp.concatenate(vec_rows, axis=0)                             # (T*B, 4H) = (16, 128)

    wh_w = head_ref[0:4 * MEM, :]                                       # (4H, HID)
    tail = head_ref[4 * MEM:HEAD_ROWS, :]                               # (8, HID)
    wh_b = tail[0:1, :]                                                 # (1, HID)
    wp_w = tail[1:2, :]                                                 # (1, HID)  wp weight as a row
    wp_b = tail[2:3, 0:1]                                               # (1, 1)

    hid = jax.nn.sigmoid(jnp.dot(vec, wh_w, preferred_element_type=f32) + wh_b)
    pred = jax.nn.sigmoid(jnp.sum(hid * wp_w, axis=-1, keepdims=True) + wp_b)   # (T*B, 1)

    # lane-dense output: out[b, t] = pred[t*B + b]
    out_ref[...] = jnp.concatenate(
        [pred[t * B:(t + 1) * B, :] for t in range(T)], axis=1)         # (B, T)


def fused_forward(lids, rids, packed):
    vmem = pl.BlockSpec(memory_space=pltpu.MemorySpace.VMEM)
    return pl.pallas_call(
        fused_kernel,
        out_shape=jax.ShapeDtypeStruct((B, T), jnp.float32),
        in_specs=[vmem] * 5,
        out_specs=vmem,
        cost_estimate=pl.CostEstimate(
            flops=2_000_000, transcendentals=19_000, bytes_accessed=76_000),
    )(lids, rids, packed["tab"], packed["wblk"], packed["head"])


# -------------------------------- parameters --------------------------------
def init_params(key):
    ks = jax.random.split(key, 11)
    s = 0.5

    emb = s * jax.random.normal(ks[0], (VOCAB, EMB), jnp.float32)
    emb = emb.at[PAD].set(0.0)                       # padding_idx row = 0

    def lstm_dir(k0, k1, k2):
        # Pre-transposed: x @ W_ih (E,4H), h @ W_hh (H,4H); gate order i,f,g,o.
        w_ih = s * jax.random.normal(k0, (EMB, 4 * MEM), jnp.float32)
        w_hh = s * jax.random.normal(k1, (MEM, 4 * MEM), jnp.float32)
        b = s * jax.random.normal(k2, (1, 4 * MEM), jnp.float32)  # b_ih+b_hh folded
        return w_ih, w_hh, b

    w_ih_f, w_hh_f, b_f = lstm_dir(ks[1], ks[2], ks[3])
    w_ih_b, w_hh_b, b_b = lstm_dir(ks[4], ks[5], ks[6])

    # Similarity(2*MEM, HID): wh: Linear(4*MEM, HID), wp: Linear(HID, 1)
    wh_w = s * jax.random.normal(ks[7], (4 * MEM, HID), jnp.float32)   # pre-transposed
    wh_b = s * jax.random.normal(ks[8], (1, HID), jnp.float32)
    wp_w = s * jax.random.normal(ks[9], (HID, 1), jnp.float32)         # pre-transposed
    wp_b = s * jax.random.normal(ks[10], (1, 1), jnp.float32)

    return dict(embedding=emb,
                w_ih_f=w_ih_f, w_hh_f=w_hh_f, b_f=b_f,
                w_ih_b=w_ih_b, w_hh_b=w_hh_b, b_b=b_b,
                wh_w=wh_w, wh_b=wh_b, wp_w=wp_w, wp_b=wp_b)


def pack_params(p):
    """Host-side one-time packing of the 12 tensors into 3 kernel buffers."""
    # Fused input tables: emb @ W_ih + (b_ih + b_hh), per direction, then
    # re-ordered into the gate-major / direction-minor column layout.
    raw_f = jnp.dot(p["embedding"], p["w_ih_f"]) + p["b_f"]     # (VOCAB, 4H)
    raw_b = jnp.dot(p["embedding"], p["w_ih_b"]) + p["b_b"]
    tab = jnp.zeros((VOCAB, H8), jnp.float32)
    wblk = jnp.zeros((H2, H8), jnp.float32)                     # block-diagonal W_hh
    for g in range(4):
        tab = tab.at[:, g * H2:g * H2 + H].set(raw_f[:, g * H:(g + 1) * H])
        tab = tab.at[:, g * H2 + H:(g + 1) * H2].set(raw_b[:, g * H:(g + 1) * H])
        wblk = wblk.at[0:H, g * H2:g * H2 + H].set(p["w_hh_f"][:, g * H:(g + 1) * H])
        wblk = wblk.at[H:H2, g * H2 + H:(g + 1) * H2].set(p["w_hh_b"][:, g * H:(g + 1) * H])

    head = jnp.zeros((HEAD_ROWS, HID), jnp.float32)
    head = head.at[0:4 * MEM, :].set(p["wh_w"])
    head = head.at[4 * MEM, :].set(p["wh_b"][0])
    head = head.at[4 * MEM + 1, :].set(p["wp_w"][:, 0])
    head = head.at[4 * MEM + 2, 0].set(p["wp_b"][0, 0])

    return dict(tab=tab.astype(jnp.bfloat16),    # bf16 MXU operands (latency path)
                wblk=wblk.astype(jnp.bfloat16),
                head=head)                       # f32 epilogue weights


# ------------------------------ full forward ---------------------------------
@jax.jit
def similarity_bilstm_forward(linputs, rinputs, packed):
    pred = fused_forward(linputs.astype(jnp.int32),
                         rinputs.astype(jnp.int32), packed)     # (B, T) lane-dense
    return pred[:, :, None]                                     # (B, T, 1), layout-free reshape


# --------------------------- pure-JAX reference ------------------------------
def reference_forward(linputs, rinputs, params):
    hi = jax.lax.Precision.HIGHEST
    emb = params["embedding"]

    def run_dir(x, w_ih, w_hh, b, reverse):
        h = jnp.zeros((x.shape[0], MEM), jnp.float32)
        c = jnp.zeros((x.shape[0], MEM), jnp.float32)
        order = range(T - 1, -1, -1) if reverse else range(T)
        outs = [None] * T
        for t in order:
            g = (jnp.dot(x[:, t, :], w_ih, precision=hi)
                 + jnp.dot(h, w_hh, precision=hi) + b)
            i = jax.nn.sigmoid(g[:, :MEM])
            f = jax.nn.sigmoid(g[:, MEM:2 * MEM])
            gg = jnp.tanh(g[:, 2 * MEM:3 * MEM])
            o = jax.nn.sigmoid(g[:, 3 * MEM:])
            c = f * c + i * gg
            h = o * jnp.tanh(c)
            outs[t] = h
        return jnp.stack(outs, axis=1)                    # (batch, T, MEM)

    def bilstm(tok):
        x = emb[tok]                                      # (batch, T, EMB)
        hf = run_dir(x, params["w_ih_f"], params["w_hh_f"], params["b_f"], False)
        hb = run_dir(x, params["w_ih_b"], params["w_hh_b"], params["b_b"], True)
        return jnp.concatenate([hf, hb], axis=-1)         # (batch, T, 2*MEM)

    lv = bilstm(linputs).reshape(-1, 2 * MEM)
    rv = bilstm(rinputs).reshape(-1, 2 * MEM)
    vec = jnp.concatenate([lv * rv, jnp.abs(lv - rv)], axis=-1)
    hid = jax.nn.sigmoid(jnp.dot(vec, params["wh_w"], precision=hi)
                         + params["wh_b"])
    pred = jax.nn.sigmoid(jnp.dot(hid, params["wp_w"], precision=hi)
                          + params["wp_b"])
    return pred.reshape(B, T, 1)


# ----------------------------------- main ------------------------------------
if __name__ == "__main__":
    key = jax.random.PRNGKey(0)
    kp, kl, kr = jax.random.split(key, 3)
    params = init_params(kp)
    packed = pack_params(params)

    linputs = jax.random.randint(kl, (B, T), 0, VOCAB, dtype=jnp.int32)
    rinputs = jax.random.randint(kr, (B, T), 0, VOCAB, dtype=jnp.int32)

    out = similarity_bilstm_forward(linputs, rinputs, packed)
    jax.block_until_ready(out)

    assert out.shape == (B, T, 1)
    assert bool(jnp.all(jnp.isfinite(out)))

    ref = reference_forward(linputs, rinputs, params)
    max_err = float(jnp.max(jnp.abs(out - ref)))
    # bf16 operands on the input table and the recurrent weight vs. the f32
    # reference: O(bf16 eps) compounded over T=8 steps -> loose 2e-2 bound.
    assert max_err < 2e-2, f"kernel/reference mismatch: {max_err}"

    print("KERNEL_OK")
</pallas_src>

<mosaic_0001>
module attributes {stable_mosaic.version = 11 : i64} {
  func.func @fused_kernel(%arg0: memref<2x8xi32, #tpu.memory_space<vmem>>, %arg1: memref<2x8xi32, #tpu.memory_space<vmem>>, %arg2: memref<50x256xbf16, #tpu.memory_space<vmem>>, %arg3: memref<64x256xbf16, #tpu.memory_space<vmem>>, %arg4: memref<136x32xf32, #tpu.memory_space<vmem>>, %arg5: memref<2x8xf32, #tpu.memory_space<vmem>>) attributes {dimension_semantics = [], scalar_prefetch = 0 : i64, scratch_operands = 0 : i64, tpu.core_type = #tpu.core_type<tc>} {
    %c0 = arith.constant 0 : index
    %c0_0 = arith.constant 0 : index
    %0 = vector.load %arg0[%c0, %c0_0] : memref<2x8xi32, #tpu.memory_space<vmem>>, vector<2x1xi32>
    %c0_1 = arith.constant 0 : index
    %c0_2 = arith.constant 0 : index
    %1 = vector.load %arg1[%c0_1, %c0_2] : memref<2x8xi32, #tpu.memory_space<vmem>>, vector<2x1xi32>
    %2 = tpu.concatenate %0, %1 in 0 : vector<2x1xi32>, vector<2x1xi32> -> vector<4x1xi32>
    %c0_3 = arith.constant 0 : index
    %c1 = arith.constant 1 : index
    %3 = vector.load %arg0[%c0_3, %c1] : memref<2x8xi32, #tpu.memory_space<vmem>>, vector<2x1xi32>
    %c0_4 = arith.constant 0 : index
    %c1_5 = arith.constant 1 : index
    %4 = vector.load %arg1[%c0_4, %c1_5] : memref<2x8xi32, #tpu.memory_space<vmem>>, vector<2x1xi32>
    %5 = tpu.concatenate %3, %4 in 0 : vector<2x1xi32>, vector<2x1xi32> -> vector<4x1xi32>
    %c0_6 = arith.constant 0 : index
    %c2 = arith.constant 2 : index
    %6 = vector.load %arg0[%c0_6, %c2] : memref<2x8xi32, #tpu.memory_space<vmem>>, vector<2x1xi32>
    %c0_7 = arith.constant 0 : index
    %c2_8 = arith.constant 2 : index
    %7 = vector.load %arg1[%c0_7, %c2_8] : memref<2x8xi32, #tpu.memory_space<vmem>>, vector<2x1xi32>
    %8 = tpu.concatenate %6, %7 in 0 : vector<2x1xi32>, vector<2x1xi32> -> vector<4x1xi32>
    %c0_9 = arith.constant 0 : index
    %c3 = arith.constant 3 : index
    %9 = vector.load %arg0[%c0_9, %c3] : memref<2x8xi32, #tpu.memory_space<vmem>>, vector<2x1xi32>
    %c0_10 = arith.constant 0 : index
    %c3_11 = arith.constant 3 : index
    %10 = vector.load %arg1[%c0_10, %c3_11] : memref<2x8xi32, #tpu.memory_space<vmem>>, vector<2x1xi32>
    %11 = tpu.concatenate %9, %10 in 0 : vector<2x1xi32>, vector<2x1xi32> -> vector<4x1xi32>
    %c0_12 = arith.constant 0 : index
    %c4 = arith.constant 4 : index
    %12 = vector.load %arg0[%c0_12, %c4] : memref<2x8xi32, #tpu.memory_space<vmem>>, vector<2x1xi32>
    %c0_13 = arith.constant 0 : index
    %c4_14 = arith.constant 4 : index
    %13 = vector.load %arg1[%c0_13, %c4_14] : memref<2x8xi32, #tpu.memory_space<vmem>>, vector<2x1xi32>
    %14 = tpu.concatenate %12, %13 in 0 : vector<2x1xi32>, vector<2x1xi32> -> vector<4x1xi32>
    %c0_15 = arith.constant 0 : index
    %c5 = arith.constant 5 : index
    %15 = vector.load %arg0[%c0_15, %c5] : memref<2x8xi32, #tpu.memory_space<vmem>>, vector<2x1xi32>
    %c0_16 = arith.constant 0 : index
    %c5_17 = arith.constant 5 : index
    %16 = vector.load %arg1[%c0_16, %c5_17] : memref<2x8xi32, #tpu.memory_space<vmem>>, vector<2x1xi32>
    %17 = tpu.concatenate %15, %16 in 0 : vector<2x1xi32>, vector<2x1xi32> -> vector<4x1xi32>
    %c0_18 = arith.constant 0 : index
    %c6 = arith.constant 6 : index
    %18 = vector.load %arg0[%c0_18, %c6] : memref<2x8xi32, #tpu.memory_space<vmem>>, vector<2x1xi32>
    %c0_19 = arith.constant 0 : index
    %c6_20 = arith.constant 6 : index
    %19 = vector.load %arg1[%c0_19, %c6_20] : memref<2x8xi32, #tpu.memory_space<vmem>>, vector<2x1xi32>
    %20 = tpu.concatenate %18, %19 in 0 : vector<2x1xi32>, vector<2x1xi32> -> vector<4x1xi32>
    %c0_21 = arith.constant 0 : index
    %c7 = arith.constant 7 : index
    %21 = vector.load %arg0[%c0_21, %c7] : memref<2x8xi32, #tpu.memory_space<vmem>>, vector<2x1xi32>
    %c0_22 = arith.constant 0 : index
    %c7_23 = arith.constant 7 : index
    %22 = vector.load %arg1[%c0_22, %c7_23] : memref<2x8xi32, #tpu.memory_space<vmem>>, vector<2x1xi32>
    %23 = tpu.concatenate %21, %22 in 0 : vector<2x1xi32>, vector<2x1xi32> -> vector<4x1xi32>
    %24 = tpu.concatenate %2, %5, %8, %11, %14, %17, %20, %23 in 0 : vector<4x1xi32>, vector<4x1xi32>, vector<4x1xi32>, vector<4x1xi32>, vector<4x1xi32>, vector<4x1xi32>, vector<4x1xi32>, vector<4x1xi32> -> vector<32x1xi32>
    %25 = tpu.iota {dimensions = array<i32: 1>} : vector<32x50xi32>
    %26 = vector.broadcast %24 : vector<32x1xi32> to vector<32x50xi32>
    %27 = arith.cmpi eq, %26, %25 : vector<32x50xi32>
    %28 = arith.extui %27 : vector<32x50xi1> to vector<32x50xi32>
    %29 = arith.sitofp %28 : vector<32x50xi32> to vector<32x50xf32>
    %30 = arith.truncf %29 : vector<32x50xf32> to vector<32x50xbf16>
    %c0_24 = arith.constant 0 : index
    %c0_25 = arith.constant 0 : index
    %31 = vector.load %arg2[%c0_24, %c0_25] : memref<50x256xbf16, #tpu.memory_space<vmem>>, vector<50x256xbf16>
    %cst = arith.constant dense<0.000000e+00> : vector<32x256xf32>
    %32 = tpu.matmul %30, %31, %cst {dimension_numbers = #tpu.dot_dimension_numbers<[1], [0], [0], [1], [0, 0, 1, 1], [], []>} : vector<32x50xbf16>, vector<50x256xbf16>, vector<32x256xf32> -> vector<32x256xf32>
    %33 = tpu.iota {dimensions = array<i32: 1>} : vector<4x256xi32>
    %c63_i32 = arith.constant 63 : i32
    %34 = vector.broadcast %c63_i32 : i32 to vector<4x256xi32>
    %35 = arith.andi %33, %34 : vector<4x256xi32>
    %c32_i32 = arith.constant 32 : i32
    %36 = vector.broadcast %c32_i32 : i32 to vector<4x256xi32>
    %37 = arith.cmpi slt, %35, %36 : vector<4x256xi32>
    %c0_26 = arith.constant 0 : index
    %c0_27 = arith.constant 0 : index
    %38 = vector.load %arg3[%c0_26, %c0_27] : memref<64x256xbf16, #tpu.memory_space<vmem>>, vector<64x256xbf16>
    %cst_28 = arith.constant 0.000000e+00 : f32
    %39 = vector.broadcast %cst_28 : f32 to vector<4x64xf32>
    %cst_29 = arith.constant 0.000000e+00 : f32
    %40 = vector.broadcast %cst_29 : f32 to vector<4x64xf32>
    %41 = vector.extract_strided_slice %32 {offsets = [0, 0], sizes = [4, 256], strides = [1, 1]} : vector<32x256xf32> to vector<4x256xf32>
    %42 = vector.extract_strided_slice %32 {offsets = [28, 0], sizes = [4, 256], strides = [1, 1]} : vector<32x256xf32> to vector<4x256xf32>
    %43 = arith.select %37, %41, %42 : vector<4x256xi1>, vector<4x256xf32>
    %44 = arith.truncf %39 : vector<4x64xf32> to vector<4x64xbf16>
    %cst_30 = arith.constant dense<0.000000e+00> : vector<4x256xf32>
    %45 = tpu.matmul %44, %38, %cst_30 {dimension_numbers = #tpu.dot_dimension_numbers<[1], [0], [0], [1], [0, 0, 1, 1], [], []>} : vector<4x64xbf16>, vector<64x256xbf16>, vector<4x256xf32> -> vector<4x256xf32>
    %46 = arith.addf %43, %45 : vector<4x256xf32>
    %47 = arith.negf %46 : vector<4x256xf32>
    %48 = math.exp %47 : vector<4x256xf32>
    %cst_31 = arith.constant 1.000000e+00 : f32
    %49 = vector.broadcast %cst_31 : f32 to vector<4x256xf32>
    %50 = arith.addf %49, %48 : vector<4x256xf32>
    %51 = arith.divf %49, %50 : vector<4x256xf32>
    %52 = math.tanh %46 : vector<4x256xf32>
    %53 = vector.extract_strided_slice %51 {offsets = [0, 0], sizes = [4, 64], strides = [1, 1]} : vector<4x256xf32> to vector<4x64xf32>
    %54 = vector.extract_strided_slice %51 {offsets = [0, 64], sizes = [4, 64], strides = [1, 1]} : vector<4x256xf32> to vector<4x64xf32>
    %55 = vector.extract_strided_slice %52 {offsets = [0, 128], sizes = [4, 64], strides = [1, 1]} : vector<4x256xf32> to vector<4x64xf32>
    %56 = vector.extract_strided_slice %51 {offsets = [0, 192], sizes = [4, 64], strides = [1, 1]} : vector<4x256xf32> to vector<4x64xf32>
    %57 = arith.mulf %54, %40 : vector<4x64xf32>
    %58 = arith.mulf %53, %55 : vector<4x64xf32>
    %59 = arith.addf %57, %58 : vector<4x64xf32>
    %60 = math.tanh %59 : vector<4x64xf32>
    %61 = arith.mulf %56, %60 : vector<4x64xf32>
    %62 = vector.extract_strided_slice %32 {offsets = [4, 0], sizes = [4, 256], strides = [1, 1]} : vector<32x256xf32> to vector<4x256xf32>
    %63 = vector.extract_strided_slice %32 {offsets = [24, 0], sizes = [4, 256], strides = [1, 1]} : vector<32x256xf32> to vector<4x256xf32>
    %64 = arith.select %37, %62, %63 : vector<4x256xi1>, vector<4x256xf32>
    %65 = arith.truncf %61 : vector<4x64xf32> to vector<4x64xbf16>
    %cst_32 = arith.constant dense<0.000000e+00> : vector<4x256xf32>
    %66 = tpu.matmul %65, %38, %cst_32 {dimension_numbers = #tpu.dot_dimension_numbers<[1], [0], [0], [1], [0, 0, 1, 1], [], []>} : vector<4x64xbf16>, vector<64x256xbf16>, vector<4x256xf32> -> vector<4x256xf32>
    %67 = arith.addf %64, %66 : vector<4x256xf32>
    %68 = arith.negf %67 : vector<4x256xf32>
    %69 = math.exp %68 : vector<4x256xf32>
    %cst_33 = arith.constant 1.000000e+00 : f32
    %70 = vector.broadcast %cst_33 : f32 to vector<4x256xf32>
    %71 = arith.addf %70, %69 : vector<4x256xf32>
    %72 = arith.divf %70, %71 : vector<4x256xf32>
    %73 = math.tanh %67 : vector<4x256xf32>
    %74 = vector.extract_strided_slice %72 {offsets = [0, 0], sizes = [4, 64], strides = [1, 1]} : vector<4x256xf32> to vector<4x64xf32>
    %75 = vector.extract_strided_slice %72 {offsets = [0, 64], sizes = [4, 64], strides = [1, 1]} : vector<4x256xf32> to vector<4x64xf32>
    %76 = vector.extract_strided_slice %73 {offsets = [0, 128], sizes = [4, 64], strides = [1, 1]} : vector<4x256xf32> to vector<4x64xf32>
    %77 = vector.extract_strided_slice %72 {offsets = [0, 192], sizes = [4, 64], strides = [1, 1]} : vector<4x256xf32> to vector<4x64xf32>
    %78 = arith.mulf %75, %59 : vector<4x64xf32>
    %79 = arith.mulf %74, %76 : vector<4x64xf32>
    %80 = arith.addf %78, %79 : vector<4x64xf32>
    %81 = math.tanh %80 : vector<4x64xf32>
    %82 = arith.mulf %77, %81 : vector<4x64xf32>
    %83 = vector.extract_strided_slice %32 {offsets = [8, 0], sizes = [4, 256], strides = [1, 1]} : vector<32x256xf32> to vector<4x256xf32>
    %84 = vector.extract_strided_slice %32 {offsets = [20, 0], sizes = [4, 256], strides = [1, 1]} : vector<32x256xf32> to vector<4x256xf32>
    %85 = arith.select %37, %83, %84 : vector<4x256xi1>, vector<4x256xf32>
    %86 = arith.truncf %82 : vector<4x64xf32> to vector<4x64xbf16>
    %cst_34 = arith.constant dense<0.000000e+00> : vector<4x256xf32>
    %87 = tpu.matmul %86, %38, %cst_34 {dimension_numbers = #tpu.dot_dimension_numbers<[1], [0], [0], [1], [0, 0, 1, 1], [], []>} : vector<4x64xbf16>, vector<64x256xbf16>, vector<4x256xf32> -> vector<4x256xf32>
    %88 = arith.addf %85, %87 : vector<4x256xf32>
    %89 = arith.negf %88 : vector<4x256xf32>
    %90 = math.exp %89 : vector<4x256xf32>
    %cst_35 = arith.constant 1.000000e+00 : f32
    %91 = vector.broadcast %cst_35 : f32 to vector<4x256xf32>
    %92 = arith.addf %91, %90 : vector<4x256xf32>
    %93 = arith.divf %91, %92 : vector<4x256xf32>
    %94 = math.tanh %88 : vector<4x256xf32>
    %95 = vector.extract_strided_slice %93 {offsets = [0, 0], sizes = [4, 64], strides = [1, 1]} : vector<4x256xf32> to vector<4x64xf32>
    %96 = vector.extract_strided_slice %93 {offsets = [0, 64], sizes = [4, 64], strides = [1, 1]} : vector<4x256xf32> to vector<4x64xf32>
    %97 = vector.extract_strided_slice %94 {offsets = [0, 128], sizes = [4, 64], strides = [1, 1]} : vector<4x256xf32> to vector<4x64xf32>
    %98 = vector.extract_strided_slice %93 {offsets = [0, 192], sizes = [4, 64], strides = [1, 1]} : vector<4x256xf32> to vector<4x64xf32>
    %99 = arith.mulf %96, %80 : vector<4x64xf32>
    %100 = arith.mulf %95, %97 : vector<4x64xf32>
    %101 = arith.addf %99, %100 : vector<4x64xf32>
    %102 = math.tanh %101 : vector<4x64xf32>
    %103 = arith.mulf %98, %102 : vector<4x64xf32>
    %104 = vector.extract_strided_slice %32 {offsets = [12, 0], sizes = [4, 256], strides = [1, 1]} : vector<32x256xf32> to vector<4x256xf32>
    %105 = vector.extract_strided_slice %32 {offsets = [16, 0], sizes = [4, 256], strides = [1, 1]} : vector<32x256xf32> to vector<4x256xf32>
    %106 = arith.select %37, %104, %105 : vector<4x256xi1>, vector<4x256xf32>
    %107 = arith.truncf %103 : vector<4x64xf32> to vector<4x64xbf16>
    %cst_36 = arith.constant dense<0.000000e+00> : vector<4x256xf32>
    %108 = tpu.matmul %107, %38, %cst_36 {dimension_numbers = #tpu.dot_dimension_numbers<[1], [0], [0], [1], [0, 0, 1, 1], [], []>} : vector<4x64xbf16>, vector<64x256xbf16>, vector<4x256xf32> -> vector<4x256xf32>
    %109 = arith.addf %106, %108 : vector<4x256xf32>
    %110 = arith.negf %109 : vector<4x256xf32>
    %111 = math.exp %110 : vector<4x256xf32>
    %cst_37 = arith.constant 1.000000e+00 : f32
    %112 = vector.broadcast %cst_37 : f32 to vector<4x256xf32>
    %113 = arith.addf %112, %111 : vector<4x256xf32>
    %114 = arith.divf %112, %113 : vector<4x256xf32>
    %115 = math.tanh %109 : vector<4x256xf32>
    %116 = vector.extract_strided_slice %114 {offsets = [0, 0], sizes = [4, 64], strides = [1, 1]} : vector<4x256xf32> to vector<4x64xf32>
    %117 = vector.extract_strided_slice %114 {offsets = [0, 64], sizes = [4, 64], strides = [1, 1]} : vector<4x256xf32> to vector<4x64xf32>
    %118 = vector.extract_strided_slice %115 {offsets = [0, 128], sizes = [4, 64], strides = [1, 1]} : vector<4x256xf32> to vector<4x64xf32>
    %119 = vector.extract_strided_slice %114 {offsets = [0, 192], sizes = [4, 64], strides = [1, 1]} : vector<4x256xf32> to vector<4x64xf32>
    %120 = arith.mulf %117, %101 : vector<4x64xf32>
    %121 = arith.mulf %116, %118 : vector<4x64xf32>
    %122 = arith.addf %120, %121 : vector<4x64xf32>
    %123 = math.tanh %122 : vector<4x64xf32>
    %124 = arith.mulf %119, %123 : vector<4x64xf32>
    %125 = vector.extract_strided_slice %32 {offsets = [16, 0], sizes = [4, 256], strides = [1, 1]} : vector<32x256xf32> to vector<4x256xf32>
    %126 = vector.extract_strided_slice %32 {offsets = [12, 0], sizes = [4, 256], strides = [1, 1]} : vector<32x256xf32> to vector<4x256xf32>
    %127 = arith.select %37, %125, %126 : vector<4x256xi1>, vector<4x256xf32>
    %128 = arith.truncf %124 : vector<4x64xf32> to vector<4x64xbf16>
    %cst_38 = arith.constant dense<0.000000e+00> : vector<4x256xf32>
    %129 = tpu.matmul %128, %38, %cst_38 {dimension_numbers = #tpu.dot_dimension_numbers<[1], [0], [0], [1], [0, 0, 1, 1], [], []>} : vector<4x64xbf16>, vector<64x256xbf16>, vector<4x256xf32> -> vector<4x256xf32>
    %130 = arith.addf %127, %129 : vector<4x256xf32>
    %131 = arith.negf %130 : vector<4x256xf32>
    %132 = math.exp %131 : vector<4x256xf32>
    %cst_39 = arith.constant 1.000000e+00 : f32
    %133 = vector.broadcast %cst_39 : f32 to vector<4x256xf32>
    %134 = arith.addf %133, %132 : vector<4x256xf32>
    %135 = arith.divf %133, %134 : vector<4x256xf32>
    %136 = math.tanh %130 : vector<4x256xf32>
    %137 = vector.extract_strided_slice %135 {offsets = [0, 0], sizes = [4, 64], strides = [1, 1]} : vector<4x256xf32> to vector<4x64xf32>
    %138 = vector.extract_strided_slice %135 {offsets = [0, 64], sizes = [4, 64], strides = [1, 1]} : vector<4x256xf32> to vector<4x64xf32>
    %139 = vector.extract_strided_slice %136 {offsets = [0, 128], sizes = [4, 64], strides = [1, 1]} : vector<4x256xf32> to vector<4x64xf32>
    %140 = vector.extract_strided_slice %135 {offsets = [0, 192], sizes = [4, 64], strides = [1, 1]} : vector<4x256xf32> to vector<4x64xf32>
    %141 = arith.mulf %138, %122 : vector<4x64xf32>
    %142 = arith.mulf %137, %139 : vector<4x64xf32>
    %143 = arith.addf %141, %142 : vector<4x64xf32>
    %144 = math.tanh %143 : vector<4x64xf32>
    %145 = arith.mulf %140, %144 : vector<4x64xf32>
    %146 = vector.extract_strided_slice %32 {offsets = [20, 0], sizes = [4, 256], strides = [1, 1]} : vector<32x256xf32> to vector<4x256xf32>
    %147 = vector.extract_strided_slice %32 {offsets = [8, 0], sizes = [4, 256], strides = [1, 1]} : vector<32x256xf32> to vector<4x256xf32>
    %148 = arith.select %37, %146, %147 : vector<4x256xi1>, vector<4x256xf32>
    %149 = arith.truncf %145 : vector<4x64xf32> to vector<4x64xbf16>
    %cst_40 = arith.constant dense<0.000000e+00> : vector<4x256xf32>
    %150 = tpu.matmul %149, %38, %cst_40 {dimension_numbers = #tpu.dot_dimension_numbers<[1], [0], [0], [1], [0, 0, 1, 1], [], []>} : vector<4x64xbf16>, vector<64x256xbf16>, vector<4x256xf32> -> vector<4x256xf32>
    %151 = arith.addf %148, %150 : vector<4x256xf32>
    %152 = arith.negf %151 : vector<4x256xf32>
    %153 = math.exp %152 : vector<4x256xf32>
    %cst_41 = arith.constant 1.000000e+00 : f32
    %154 = vector.broadcast %cst_41 : f32 to vector<4x256xf32>
    %155 = arith.addf %154, %153 : vector<4x256xf32>
    %156 = arith.divf %154, %155 : vector<4x256xf32>
    %157 = math.tanh %151 : vector<4x256xf32>
    %158 = vector.extract_strided_slice %156 {offsets = [0, 0], sizes = [4, 64], strides = [1, 1]} : vector<4x256xf32> to vector<4x64xf32>
    %159 = vector.extract_strided_slice %156 {offsets = [0, 64], sizes = [4, 64], strides = [1, 1]} : vector<4x256xf32> to vector<4x64xf32>
    %160 = vector.extract_strided_slice %157 {offsets = [0, 128], sizes = [4, 64], strides = [1, 1]} : vector<4x256xf32> to vector<4x64xf32>
    %161 = vector.extract_strided_slice %156 {offsets = [0, 192], sizes = [4, 64], strides = [1, 1]} : vector<4x256xf32> to vector<4x64xf32>
    %162 = arith.mulf %159, %143 : vector<4x64xf32>
    %163 = arith.mulf %158, %160 : vector<4x64xf32>
    %164 = arith.addf %162, %163 : vector<4x64xf32>
    %165 = math.tanh %164 : vector<4x64xf32>
    %166 = arith.mulf %161, %165 : vector<4x64xf32>
    %167 = vector.extract_strided_slice %32 {offsets = [24, 0], sizes = [4, 256], strides = [1, 1]} : vector<32x256xf32> to vector<4x256xf32>
    %168 = vector.extract_strided_slice %32 {offsets = [4, 0], sizes = [4, 256], strides = [1, 1]} : vector<32x256xf32> to vector<4x256xf32>
    %169 = arith.select %37, %167, %168 : vector<4x256xi1>, vector<4x256xf32>
    %170 = arith.truncf %166 : vector<4x64xf32> to vector<4x64xbf16>
    %cst_42 = arith.constant dense<0.000000e+00> : vector<4x256xf32>
    %171 = tpu.matmul %170, %38, %cst_42 {dimension_numbers = #tpu.dot_dimension_numbers<[1], [0], [0], [1], [0, 0, 1, 1], [], []>} : vector<4x64xbf16>, vector<64x256xbf16>, vector<4x256xf32> -> vector<4x256xf32>
    %172 = arith.addf %169, %171 : vector<4x256xf32>
    %173 = arith.negf %172 : vector<4x256xf32>
    %174 = math.exp %173 : vector<4x256xf32>
    %cst_43 = arith.constant 1.000000e+00 : f32
    %175 = vector.broadcast %cst_43 : f32 to vector<4x256xf32>
    %176 = arith.addf %175, %174 : vector<4x256xf32>
    %177 = arith.divf %175, %176 : vector<4x256xf32>
    %178 = math.tanh %172 : vector<4x256xf32>
    %179 = vector.extract_strided_slice %177 {offsets = [0, 0], sizes = [4, 64], strides = [1, 1]} : vector<4x256xf32> to vector<4x64xf32>
    %180 = vector.extract_strided_slice %177 {offsets = [0, 64], sizes = [4, 64], strides = [1, 1]} : vector<4x256xf32> to vector<4x64xf32>
    %181 = vector.extract_strided_slice %178 {offsets = [0, 128], sizes = [4, 64], strides = [1, 1]} : vector<4x256xf32> to vector<4x64xf32>
    %182 = vector.extract_strided_slice %177 {offsets = [0, 192], sizes = [4, 64], strides = [1, 1]} : vector<4x256xf32> to vector<4x64xf32>
    %183 = arith.mulf %180, %164 : vector<4x64xf32>
    %184 = arith.mulf %179, %181 : vector<4x64xf32>
    %185 = arith.addf %183, %184 : vector<4x64xf32>
    %186 = math.tanh %185 : vector<4x64xf32>
    %187 = arith.mulf %182, %186 : vector<4x64xf32>
    %188 = vector.extract_strided_slice %32 {offsets = [28, 0], sizes = [4, 256], strides = [1, 1]} : vector<32x256xf32> to vector<4x256xf32>
    %189 = vector.extract_strided_slice %32 {offsets = [0, 0], sizes = [4, 256], strides = [1, 1]} : vector<32x256xf32> to vector<4x256xf32>
    %190 = arith.select %37, %188, %189 : vector<4x256xi1>, vector<4x256xf32>
    %191 = arith.truncf %187 : vector<4x64xf32> to vector<4x64xbf16>
    %cst_44 = arith.constant dense<0.000000e+00> : vector<4x256xf32>
    %192 = tpu.matmul %191, %38, %cst_44 {dimension_numbers = #tpu.dot_dimension_numbers<[1], [0], [0], [1], [0, 0, 1, 1], [], []>} : vector<4x64xbf16>, vector<64x256xbf16>, vector<4x256xf32> -> vector<4x256xf32>
    %193 = arith.addf %190, %192 : vector<4x256xf32>
    %194 = arith.negf %193 : vector<4x256xf32>
    %195 = math.exp %194 : vector<4x256xf32>
    %cst_45 = arith.constant 1.000000e+00 : f32
    %196 = vector.broadcast %cst_45 : f32 to vector<4x256xf32>
    %197 = arith.addf %196, %195 : vector<4x256xf32>
    %198 = arith.divf %196, %197 : vector<4x256xf32>
    %199 = math.tanh %193 : vector<4x256xf32>
    %200 = vector.extract_strided_slice %198 {offsets = [0, 0], sizes = [4, 64], strides = [1, 1]} : vector<4x256xf32> to vector<4x64xf32>
    %201 = vector.extract_strided_slice %198 {offsets = [0, 64], sizes = [4, 64], strides = [1, 1]} : vector<4x256xf32> to vector<4x64xf32>
    %202 = vector.extract_strided_slice %199 {offsets = [0, 128], sizes = [4, 64], strides = [1, 1]} : vector<4x256xf32> to vector<4x64xf32>
    %203 = vector.extract_strided_slice %198 {offsets = [0, 192], sizes = [4, 64], strides = [1, 1]} : vector<4x256xf32> to vector<4x64xf32>
    %204 = arith.mulf %201, %185 : vector<4x64xf32>
    %205 = arith.mulf %200, %202 : vector<4x64xf32>
    %206 = arith.addf %204, %205 : vector<4x64xf32>
    %207 = math.tanh %206 : vector<4x64xf32>
    %208 = arith.mulf %203, %207 : vector<4x64xf32>
    %209 = vector.extract_strided_slice %61 {offsets = [0, 0], sizes = [4, 32], strides = [1, 1]} : vector<4x64xf32> to vector<4x32xf32>
    %210 = vector.extract_strided_slice %208 {offsets = [0, 32], sizes = [4, 32], strides = [1, 1]} : vector<4x64xf32> to vector<4x32xf32>
    %211 = vector.extract_strided_slice %209 {offsets = [0, 0], sizes = [2, 32], strides = [1, 1]} : vector<4x32xf32> to vector<2x32xf32>
    %212 = vector.extract_strided_slice %210 {offsets = [0, 0], sizes = [2, 32], strides = [1, 1]} : vector<4x32xf32> to vector<2x32xf32>
    %213 = tpu.concatenate %211, %212 in 1 : vector<2x32xf32>, vector<2x32xf32> -> vector<2x64xf32>
    %214 = vector.extract_strided_slice %209 {offsets = [2, 0], sizes = [2, 32], strides = [1, 1]} : vector<4x32xf32> to vector<2x32xf32>
    %215 = vector.extract_strided_slice %210 {offsets = [2, 0], sizes = [2, 32], strides = [1, 1]} : vector<4x32xf32> to vector<2x32xf32>
    %216 = tpu.concatenate %214, %215 in 1 : vector<2x32xf32>, vector<2x32xf32> -> vector<2x64xf32>
    %217 = arith.mulf %213, %216 : vector<2x64xf32>
    %218 = arith.subf %213, %216 : vector<2x64xf32>
    %219 = math.absf %218 : vector<2x64xf32>
    %220 = tpu.concatenate %217, %219 in 1 : vector<2x64xf32>, vector<2x64xf32> -> vector<2x128xf32>
    %221 = vector.extract_strided_slice %82 {offsets = [0, 0], sizes = [4, 32], strides = [1, 1]} : vector<4x64xf32> to vector<4x32xf32>
    %222 = vector.extract_strided_slice %187 {offsets = [0, 32], sizes = [4, 32], strides = [1, 1]} : vector<4x64xf32> to vector<4x32xf32>
    %223 = vector.extract_strided_slice %221 {offsets = [0, 0], sizes = [2, 32], strides = [1, 1]} : vector<4x32xf32> to vector<2x32xf32>
    %224 = vector.extract_strided_slice %222 {offsets = [0, 0], sizes = [2, 32], strides = [1, 1]} : vector<4x32xf32> to vector<2x32xf32>
    %225 = tpu.concatenate %223, %224 in 1 : vector<2x32xf32>, vector<2x32xf32> -> vector<2x64xf32>
    %226 = vector.extract_strided_slice %221 {offsets = [2, 0], sizes = [2, 32], strides = [1, 1]} : vector<4x32xf32> to vector<2x32xf32>
    %227 = vector.extract_strided_slice %222 {offsets = [2, 0], sizes = [2, 32], strides = [1, 1]} : vector<4x32xf32> to vector<2x32xf32>
    %228 = tpu.concatenate %226, %227 in 1 : vector<2x32xf32>, vector<2x32xf32> -> vector<2x64xf32>
    %229 = arith.mulf %225, %228 : vector<2x64xf32>
    %230 = arith.subf %225, %228 : vector<2x64xf32>
    %231 = math.absf %230 : vector<2x64xf32>
    %232 = tpu.concatenate %229, %231 in 1 : vector<2x64xf32>, vector<2x64xf32> -> vector<2x128xf32>
    %233 = vector.extract_strided_slice %103 {offsets = [0, 0], sizes = [4, 32], strides = [1, 1]} : vector<4x64xf32> to vector<4x32xf32>
    %234 = vector.extract_strided_slice %166 {offsets = [0, 32], sizes = [4, 32], strides = [1, 1]} : vector<4x64xf32> to vector<4x32xf32>
    %235 = vector.extract_strided_slice %233 {offsets = [0, 0], sizes = [2, 32], strides = [1, 1]} : vector<4x32xf32> to vector<2x32xf32>
    %236 = vector.extract_strided_slice %234 {offsets = [0, 0], sizes = [2, 32], strides = [1, 1]} : vector<4x32xf32> to vector<2x32xf32>
    %237 = tpu.concatenate %235, %236 in 1 : vector<2x32xf32>, vector<2x32xf32> -> vector<2x64xf32>
    %238 = vector.extract_strided_slice %233 {offsets = [2, 0], sizes = [2, 32], strides = [1, 1]} : vector<4x32xf32> to vector<2x32xf32>
    %239 = vector.extract_strided_slice %234 {offsets = [2, 0], sizes = [2, 32], strides = [1, 1]} : vector<4x32xf32> to vector<2x32xf32>
    %240 = tpu.concatenate %238, %239 in 1 : vector<2x32xf32>, vector<2x32xf32> -> vector<2x64xf32>
    %241 = arith.mulf %237, %240 : vector<2x64xf32>
    %242 = arith.subf %237, %240 : vector<2x64xf32>
    %243 = math.absf %242 : vector<2x64xf32>
    %244 = tpu.concatenate %241, %243 in 1 : vector<2x64xf32>, vector<2x64xf32> -> vector<2x128xf32>
    %245 = vector.extract_strided_slice %124 {offsets = [0, 0], sizes = [4, 32], strides = [1, 1]} : vector<4x64xf32> to vector<4x32xf32>
    %246 = vector.extract_strided_slice %145 {offsets = [0, 32], sizes = [4, 32], strides = [1, 1]} : vector<4x64xf32> to vector<4x32xf32>
    %247 = vector.extract_strided_slice %245 {offsets = [0, 0], sizes = [2, 32], strides = [1, 1]} : vector<4x32xf32> to vector<2x32xf32>
    %248 = vector.extract_strided_slice %246 {offsets = [0, 0], sizes = [2, 32], strides = [1, 1]} : vector<4x32xf32> to vector<2x32xf32>
    %249 = tpu.concatenate %247, %248 in 1 : vector<2x32xf32>, vector<2x32xf32> -> vector<2x64xf32>
    %250 = vector.extract_strided_slice %245 {offsets = [2, 0], sizes = [2, 32], strides = [1, 1]} : vector<4x32xf32> to vector<2x32xf32>
    %251 = vector.extract_strided_slice %246 {offsets = [2, 0], sizes = [2, 32], strides = [1, 1]} : vector<4x32xf32> to vector<2x32xf32>
    %252 = tpu.concatenate %250, %251 in 1 : vector<2x32xf32>, vector<2x32xf32> -> vector<2x64xf32>
    %253 = arith.mulf %249, %252 : vector<2x64xf32>
    %254 = arith.subf %249, %252 : vector<2x64xf32>
    %255 = math.absf %254 : vector<2x64xf32>
    %256 = tpu.concatenate %253, %255 in 1 : vector<2x64xf32>, vector<2x64xf32> -> vector<2x128xf32>
    %257 = vector.extract_strided_slice %145 {offsets = [0, 0], sizes = [4, 32], strides = [1, 1]} : vector<4x64xf32> to vector<4x32xf32>
    %258 = vector.extract_strided_slice %124 {offsets = [0, 32], sizes = [4, 32], strides = [1, 1]} : vector<4x64xf32> to vector<4x32xf32>
    %259 = vector.extract_strided_slice %257 {offsets = [0, 0], sizes = [2, 32], strides = [1, 1]} : vector<4x32xf32> to vector<2x32xf32>
    %260 = vector.extract_strided_slice %258 {offsets = [0, 0], sizes = [2, 32], strides = [1, 1]} : vector<4x32xf32> to vector<2x32xf32>
    %261 = tpu.concatenate %259, %260 in 1 : vector<2x32xf32>, vector<2x32xf32> -> vector<2x64xf32>
    %262 = vector.extract_strided_slice %257 {offsets = [2, 0], sizes = [2, 32], strides = [1, 1]} : vector<4x32xf32> to vector<2x32xf32>
    %263 = vector.extract_strided_slice %258 {offsets = [2, 0], sizes = [2, 32], strides = [1, 1]} : vector<4x32xf32> to vector<2x32xf32>
    %264 = tpu.concatenate %262, %263 in 1 : vector<2x32xf32>, vector<2x32xf32> -> vector<2x64xf32>
    %265 = arith.mulf %261, %264 : vector<2x64xf32>
    %266 = arith.subf %261, %264 : vector<2x64xf32>
    %267 = math.absf %266 : vector<2x64xf32>
    %268 = tpu.concatenate %265, %267 in 1 : vector<2x64xf32>, vector<2x64xf32> -> vector<2x128xf32>
    %269 = vector.extract_strided_slice %166 {offsets = [0, 0], sizes = [4, 32], strides = [1, 1]} : vector<4x64xf32> to vector<4x32xf32>
    %270 = vector.extract_strided_slice %103 {offsets = [0, 32], sizes = [4, 32], strides = [1, 1]} : vector<4x64xf32> to vector<4x32xf32>
    %271 = vector.extract_strided_slice %269 {offsets = [0, 0], sizes = [2, 32], strides = [1, 1]} : vector<4x32xf32> to vector<2x32xf32>
    %272 = vector.extract_strided_slice %270 {offsets = [0, 0], sizes = [2, 32], strides = [1, 1]} : vector<4x32xf32> to vector<2x32xf32>
    %273 = tpu.concatenate %271, %272 in 1 : vector<2x32xf32>, vector<2x32xf32> -> vector<2x64xf32>
    %274 = vector.extract_strided_slice %269 {offsets = [2, 0], sizes = [2, 32], strides = [1, 1]} : vector<4x32xf32> to vector<2x32xf32>
    %275 = vector.extract_strided_slice %270 {offsets = [2, 0], sizes = [2, 32], strides = [1, 1]} : vector<4x32xf32> to vector<2x32xf32>
    %276 = tpu.concatenate %274, %275 in 1 : vector<2x32xf32>, vector<2x32xf32> -> vector<2x64xf32>
    %277 = arith.mulf %273, %276 : vector<2x64xf32>
    %278 = arith.subf %273, %276 : vector<2x64xf32>
    %279 = math.absf %278 : vector<2x64xf32>
    %280 = tpu.concatenate %277, %279 in 1 : vector<2x64xf32>, vector<2x64xf32> -> vector<2x128xf32>
    %281 = vector.extract_strided_slice %187 {offsets = [0, 0], sizes = [4, 32], strides = [1, 1]} : vector<4x64xf32> to vector<4x32xf32>
    %282 = vector.extract_strided_slice %82 {offsets = [0, 32], sizes = [4, 32], strides = [1, 1]} : vector<4x64xf32> to vector<4x32xf32>
    %283 = vector.extract_strided_slice %281 {offsets = [0, 0], sizes = [2, 32], strides = [1, 1]} : vector<4x32xf32> to vector<2x32xf32>
    %284 = vector.extract_strided_slice %282 {offsets = [0, 0], sizes = [2, 32], strides = [1, 1]} : vector<4x32xf32> to vector<2x32xf32>
    %285 = tpu.concatenate %283, %284 in 1 : vector<2x32xf32>, vector<2x32xf32> -> vector<2x64xf32>
    %286 = vector.extract_strided_slice %281 {offsets = [2, 0], sizes = [2, 32], strides = [1, 1]} : vector<4x32xf32> to vector<2x32xf32>
    %287 = vector.extract_strided_slice %282 {offsets = [2, 0], sizes = [2, 32], strides = [1, 1]} : vector<4x32xf32> to vector<2x32xf32>
    %288 = tpu.concatenate %286, %287 in 1 : vector<2x32xf32>, vector<2x32xf32> -> vector<2x64xf32>
    %289 = arith.mulf %285, %288 : vector<2x64xf32>
    %290 = arith.subf %285, %288 : vector<2x64xf32>
    %291 = math.absf %290 : vector<2x64xf32>
    %292 = tpu.concatenate %289, %291 in 1 : vector<2x64xf32>, vector<2x64xf32> -> vector<2x128xf32>
    %293 = vector.extract_strided_slice %208 {offsets = [0, 0], sizes = [4, 32], strides = [1, 1]} : vector<4x64xf32> to vector<4x32xf32>
    %294 = vector.extract_strided_slice %61 {offsets = [0, 32], sizes = [4, 32], strides = [1, 1]} : vector<4x64xf32> to vector<4x32xf32>
    %295 = vector.extract_strided_slice %293 {offsets = [0, 0], sizes = [2, 32], strides = [1, 1]} : vector<4x32xf32> to vector<2x32xf32>
    %296 = vector.extract_strided_slice %294 {offsets = [0, 0], sizes = [2, 32], strides = [1, 1]} : vector<4x32xf32> to vector<2x32xf32>
    %297 = tpu.concatenate %295, %296 in 1 : vector<2x32xf32>, vector<2x32xf32> -> vector<2x64xf32>
    %298 = vector.extract_strided_slice %293 {offsets = [2, 0], sizes = [2, 32], strides = [1, 1]} : vector<4x32xf32> to vector<2x32xf32>
    %299 = vector.extract_strided_slice %294 {offsets = [2, 0], sizes = [2, 32], strides = [1, 1]} : vector<4x32xf32> to vector<2x32xf32>
    %300 = tpu.concatenate %298, %299 in 1 : vector<2x32xf32>, vector<2x32xf32> -> vector<2x64xf32>
    %301 = arith.mulf %297, %300 : vector<2x64xf32>
    %302 = arith.subf %297, %300 : vector<2x64xf32>
    %303 = math.absf %302 : vector<2x64xf32>
    %304 = tpu.concatenate %301, %303 in 1 : vector<2x64xf32>, vector<2x64xf32> -> vector<2x128xf32>
    %305 = tpu.concatenate %220, %232, %244, %256, %268, %280, %292, %304 in 0 : vector<2x128xf32>, vector<2x128xf32>, vector<2x128xf32>, vector<2x128xf32>, vector<2x128xf32>, vector<2x128xf32>, vector<2x128xf32>, vector<2x128xf32> -> vector<16x128xf32>
    %c0_46 = arith.constant 0 : index
    %c0_47 = arith.constant 0 : index
    %306 = vector.load %arg4[%c0_46, %c0_47] : memref<136x32xf32, #tpu.memory_space<vmem>>, vector<128x32xf32>
    %c128 = arith.constant 128 : index
    %c0_48 = arith.constant 0 : index
    %307 = vector.load %arg4[%c128, %c0_48] : memref<136x32xf32, #tpu.memory_space<vmem>>, vector<8x32xf32>
    %308 = vector.extract_strided_slice %307 {offsets = [0, 0], sizes = [1, 32], strides = [1, 1]} : vector<8x32xf32> to vector<1x32xf32>
    %309 = vector.extract_strided_slice %307 {offsets = [1, 0], sizes = [1, 32], strides = [1, 1]} : vector<8x32xf32> to vector<1x32xf32>
    %310 = vector.extract_strided_slice %307 {offsets = [2, 0], sizes = [1, 1], strides = [1, 1]} : vector<8x32xf32> to vector<1x1xf32>
    %cst_49 = arith.constant dense<0.000000e+00> : vector<16x32xf32>
    %311 = tpu.matmul %305, %306, %cst_49 {dimension_numbers = #tpu.dot_dimension_numbers<[1], [0], [0], [1], [0, 0, 1, 1], [], []>} : vector<16x128xf32>, vector<128x32xf32>, vector<16x32xf32> -> vector<16x32xf32>
    %312 = vector.broadcast %308 : vector<1x32xf32> to vector<16x32xf32>
    %313 = arith.addf %311, %312 : vector<16x32xf32>
    %314 = arith.negf %313 : vector<16x32xf32>
    %315 = math.exp %314 : vector<16x32xf32>
    %cst_50 = arith.constant 1.000000e+00 : f32
    %316 = vector.broadcast %cst_50 : f32 to vector<16x32xf32>
    %317 = arith.addf %316, %315 : vector<16x32xf32>
    %318 = arith.divf %316, %317 : vector<16x32xf32>
    %319 = vector.broadcast %309 : vector<1x32xf32> to vector<16x32xf32>
    %320 = arith.mulf %318, %319 : vector<16x32xf32>
    %cst_51 = arith.constant dense<0.000000e+00> : vector<16xf32>
    %321 = vector.multi_reduction <add>, %320, %cst_51 [1] : vector<16x32xf32> to vector<16xf32>
    %322 = vector.shape_cast %321 : vector<16xf32> to vector<16x1xf32>
    %323 = vector.broadcast %310 : vector<1x1xf32> to vector<16x1xf32>
    %324 = arith.addf %322, %323 : vector<16x1xf32>
    %325 = arith.negf %324 : vector<16x1xf32>
    %326 = math.exp %325 : vector<16x1xf32>
    %cst_52 = arith.constant 1.000000e+00 : f32
    %327 = vector.broadcast %cst_52 : f32 to vector<16x1xf32>
    %328 = arith.addf %327, %326 : vector<16x1xf32>
    %329 = arith.divf %327, %328 : vector<16x1xf32>
    %330 = vector.extract_strided_slice %329 {offsets = [0, 0], sizes = [2, 1], strides = [1, 1]} : vector<16x1xf32> to vector<2x1xf32>
    %331 = vector.extract_strided_slice %329 {offsets = [2, 0], sizes = [2, 1], strides = [1, 1]} : vector<16x1xf32> to vector<2x1xf32>
    %332 = vector.extract_strided_slice %329 {offsets = [4, 0], sizes = [2, 1], strides = [1, 1]} : vector<16x1xf32> to vector<2x1xf32>
    %333 = vector.extract_strided_slice %329 {offsets = [6, 0], sizes = [2, 1], strides = [1, 1]} : vector<16x1xf32> to vector<2x1xf32>
    %334 = vector.extract_strided_slice %329 {offsets = [8, 0], sizes = [2, 1], strides = [1, 1]} : vector<16x1xf32> to vector<2x1xf32>
    %335 = vector.extract_strided_slice %329 {offsets = [10, 0], sizes = [2, 1], strides = [1, 1]} : vector<16x1xf32> to vector<2x1xf32>
    %336 = vector.extract_strided_slice %329 {offsets = [12, 0], sizes = [2, 1], strides = [1, 1]} : vector<16x1xf32> to vector<2x1xf32>
    %337 = vector.extract_strided_slice %329 {offsets = [14, 0], sizes = [2, 1], strides = [1, 1]} : vector<16x1xf32> to vector<2x1xf32>
    %338 = tpu.concatenate %330, %331, %332, %333, %334, %335, %336, %337 in 1 : vector<2x1xf32>, vector<2x1xf32>, vector<2x1xf32>, vector<2x1xf32>, vector<2x1xf32>, vector<2x1xf32>, vector<2x1xf32>, vector<2x1xf32> -> vector<2x8xf32>
    %c0_53 = arith.constant 0 : index
    %c0_54 = arith.constant 0 : index
    %339 = vector.load %arg5[%c0_53, %c0_54] : memref<2x8xf32, #tpu.memory_space<vmem>>, vector<2x8xf32>
    tpu.vector_store %arg5[%c0_53, %c0_54], %338 {strides = array<i32>} : memref<2x8xf32, #tpu.memory_space<vmem>>, vector<2x8xf32>,
    return
  }
}

</mosaic_0001>

<llo_original>
// kernel: similarity_bilstm_forward.1
$region0: #{similarity_bilstm_forward.1}
  #allocation0 [shape = 'u32[]', space=smem, size = 0x4, offset = 0x4, fixed_abs, tag = 'smem constant byte address 0x4 - core index']
  #allocation1 [shape = 'u32[144,128]{1,0:T(1,128)}', space=vmem, size = 0x12000, scoped, tag = 'internal scratch']
  %s0 = inlined_call_operand.vmem [shape: s32[2,8], index: 0, kind: input, shape index: {}]
  %s1 = inlined_call_operand.vmem [shape: s32[2,8], index: 1, kind: input, shape index: {}]
  %s2 = inlined_call_operand.vmem [shape: bf16[50,256], index: 2, kind: input, shape index: {}]
  %s3 = inlined_call_operand.vmem [shape: bf16[64,256], index: 3, kind: input, shape index: {}]
  %s4 = inlined_call_operand.vmem [shape: f32[136,32], index: 4, kind: input, shape index: {}]
  %s5 = inlined_call_operand.hbm [shape: f32[2,8], index: 5, kind: output, shape index: {}]
  %s6 = sld [smem:[#allocation0]]
  $region30: #{similarity_bilstm_forward.1} parent=0
    _
  %s8 = ssub.s32 1, %s6
  %s9 = scalar_select 0, %s8, %s6
  $region1: #{similarity_bilstm_forward.1} parent=0
    #allocation2 [shape = 'u8[1024]{0}', space=vmem, size = 0x400, scoped, tag = 'output window, operand 0, single buffered']
    #allocation3 [shape = 's32[1]{0}', space=sflag, size = 0x4, scoped, tag = 'scoped memory for similarity_bilstm_forward.1']
    %10 = vsyncpa [#allocation3], 0
    // Predicated region
    $region2: #{similarity_bilstm_forward.1} parent=1 // pred_check
      _
    $region3: #{similarity_bilstm_forward.1} parent=1 // pred_check_branch
      %12 = sbr.rel (0) target = $region5
    $region4: #{similarity_bilstm_forward.1} parent=1 // pred_region
      _
    $region5: #{similarity_bilstm_forward.1} parent=1 // pred_fallthru
      _
    // Predicated region
    $region6: #{similarity_bilstm_forward.1} parent=1 // pred_check
      _
    $region7: #{similarity_bilstm_forward.1} parent=1 // pred_check_branch
      %14 = sbr.rel (0) target = $region9
    $region8: #{similarity_bilstm_forward.1} parent=1 // pred_region
      _
    $region9: #{similarity_bilstm_forward.1} parent=1 // pred_fallthru
      _
    // Predicated region
    $region10: #{similarity_bilstm_forward.1} parent=1 // pred_check
      _
    $region11: #{similarity_bilstm_forward.1} parent=1 // pred_check_branch
      %16 = sbr.rel (0) target = $region13
    $region12: #{similarity_bilstm_forward.1} parent=1 // pred_region
      _
    $region13: #{similarity_bilstm_forward.1} parent=1 // pred_fallthru
      _
    // Predicated region
    $region14: #{similarity_bilstm_forward.1} parent=1 // pred_check
      _
    $region15: #{similarity_bilstm_forward.1} parent=1 // pred_check_branch
      %18 = sbr.rel (0) target = $region17
    $region16: #{similarity_bilstm_forward.1} parent=1 // pred_region
      _
    $region17: #{similarity_bilstm_forward.1} parent=1 // pred_fallthru
      _
    // Predicated region
    $region18: #{similarity_bilstm_forward.1} parent=1 // pred_check
      _
    $region19: #{similarity_bilstm_forward.1} parent=1 // pred_check_branch
      %20 = sbr.rel (0) target = $region21
    $region20: #{similarity_bilstm_forward.1} parent=1 // pred_region
      _
    $region21: #{similarity_bilstm_forward.1} parent=1 // pred_fallthru
      _
    %v22 = vld [vmem:[%s0] sm:$0x3]
    %v23 = vld [vmem:[%s1] sm:$0x3]
    %v24 = vrot.slane %v23, 6
    %vm25 = vcmask 1041408
    %v26 = vsel %vm25, %v22, %v24
    %v27 = vrot.slane %v26, 4
    %28 = vrot.lane.b32.xlu0 %v27, 127
    %v29 = vpop.permute.xlu0 %28
    %30 = vrot.lane.b32.xlu0 %v26, 126
    %v31 = vpop.permute.xlu0 %30
    %32 = vrot.lane.b32.xlu0 %v27, 125
    %v33 = vpop.permute.xlu0 %32
    %34 = vrot.lane.b32.xlu0 %v26, 124
    %v35 = vpop.permute.xlu0 %34
    %36 = vrot.lane.b32.xlu0 %v27, 123
    %v37 = vpop.permute.xlu0 %36
    %38 = vrot.lane.b32.xlu0 %v26, 122
    %v39 = vpop.permute.xlu0 %38
    %40 = vrot.lane.b32.xlu0 %v27, 121
    %v41 = vpop.permute.xlu0 %40
    %vm42 = vcmask 1043456
    %v43 = vsel %vm42, %v26, %v29
    %v44 = vsel %vm42, %v31, %v33
    %v45 = vsel %vm42, %v35, %v37
    %v46 = vsel %vm42, %v39, %v41
    %v47 = vlaneseq
    %v48 = vand.u32 %v47, 127
    %49 = vset.pattern.permute.xlu0 0
    %50 = vperm.xlu0 %49, %v43
    %v51 = vpop.permute.xlu0 %50
    %52 = vset.pattern.permute.xlu0 0
    %53 = vperm.xlu0 %52, %v44
    %v54 = vpop.permute.xlu0 %53
    %55 = vset.pattern.permute.xlu0 0
    %56 = vperm.xlu0 %55, %v45
    %v57 = vpop.permute.xlu0 %56
    %58 = vset.pattern.permute.xlu0 0
    %59 = vperm.xlu0 %58, %v46
    %v60 = vpop.permute.xlu0 %59
    %vm61 = vcmp.eq.s32.totalorder %v51, %v48
    %vm62 = vcmp.eq.s32.totalorder %v54, %v48
    %vm63 = vcmp.eq.s32.totalorder %v57, %v48
    %vm64 = vcmp.eq.s32.totalorder %v60, %v48
    %v65 = vsel %vm61, 1, 0
    %v66 = vsel %vm62, 1, 0
    %v67 = vsel %vm63, 1, 0
    %v68 = vsel %vm64, 1, 0
    %v69 = vcvt.s32.f32 %v65
    %v70 = vcvt.s32.f32 %v66
    %v71 = vcvt.s32.f32 %v67
    %v72 = vcvt.s32.f32 %v68
    %v73 = vpack.c.bf16 %v70, %v69
    %v74 = vpack.c.bf16 %v72, %v71
    %v75 = vld [vmem:[%s2] sm:$0xff]
    %v76 = vld [vmem:[%s2 + $0x8] sm:$0xff]
    %v77 = vld [vmem:[%s2 + $0x10] sm:$0xff]
    %v78 = vld [vmem:[%s2 + $0x18] sm:$0xff]
    %v79 = vld [vmem:[%s2 + $0x20] sm:$0xff]
    %v80 = vld [vmem:[%s2 + $0x28] sm:$0xff]
    %v81 = vld [vmem:[%s2 + $0x30] sm:$0x11]
    %v89 = vunpack.c.l.b16 %v75
    %v90 = vunpack.c.h.b16 %v75
    %v91 = vunpack.c.l.b16 %v76
    %v92 = vunpack.c.h.b16 %v76
    %v93 = vunpack.c.l.b16 %v77
    %v94 = vunpack.c.h.b16 %v77
    %v95 = vunpack.c.l.b16 %v78
    %v96 = vunpack.c.h.b16 %v78
    %v97 = vunpack.c.l.b16 %v79
    %v98 = vunpack.c.h.b16 %v79
    %v99 = vunpack.c.l.b16 %v80
    %v100 = vunpack.c.h.b16 %v80
    %v101 = vunpack.c.l.b16 %v81
    %v102 = vunpack.c.h.b16 %v81
    %v103 = vpack.c.b16 %v91, %v89
    %v104 = vpack.c.b16 %v92, %v90
    %v105 = vpack.c.b16 %v95, %v93
    %v106 = vpack.c.b16 %v96, %v94
    %v107 = vpack.c.b16 %v99, %v97
    %v108 = vpack.c.b16 %v100, %v98
    %v109 = vpack.c.b16 %v101, %v101
    %v110 = vpack.c.b16 %v102, %v102
    %vm117 = vcmask 408576
    %v119 = vsel %vm117, %v73, 0
    %v122 = vsel %vm117, %v74, 0
    %vm124 = vcmask 1040384
    %v126 = vsel %vm124, %v109, 0
    %v129 = vsel %vm124, %v110, 0
    %131 = vmatprep.subr.bf16.mxu0 %v104
    %132 = vmatpush1.bf16.msra.mxu0 %v103
    %133 = vmatprep.subr.bf16.mxu0 %v106
    %134 = vmatpush1.bf16.msra.mxu0 %v105
    %135 = vmatprep.subr.bf16.mxu0 %v108
    %136 = vmatpush1.bf16.msra.mxu0 %v107
    %137 = vmatprep.subr.bf16.mxu0 %v129
    %138 = vmatpush1.bf16.msra.mxu0 %v126
    %139 = vmatprep.subr.bf16.mxu0 0
    %140 = vmatpush1.bf16.msra.mxu0 0
    %141 = vmatprep.subr.bf16.mxu0 0
    %142 = vmatpush1.bf16.msra.mxu0 0
    %143 = vmatprep.subr.bf16.mxu0 0
    %144 = vmatpush1.bf16.msra.mxu0 0
    %145 = vmatprep.subr.bf16.mxu0 0
    %146 = vmatpush1.bf16.msra.mxu0 0
    %147 = vmatprep.subr.bf16.mxu0 0
    %148 = vmatpush1.bf16.msra.mxu0 0
    %149 = vmatprep.subr.bf16.mxu0 0
    %150 = vmatpush1.bf16.msra.mxu0 0
    %151 = vmatprep.subr.bf16.mxu0 0
    %152 = vmatpush1.bf16.msra.mxu0 0
    %153 = vmatprep.subr.bf16.mxu0 0
    %154 = vmatpush1.bf16.msra.mxu0 0
    %155 = vmatprep.subr.bf16.mxu0 0
    %156 = vmatpush1.bf16.msra.mxu0 0
    %157 = vmatprep.subr.bf16.mxu0 0
    %158 = vmatpush1.bf16.msra.mxu0 0
    %159 = vmatprep.subr.bf16.mxu0 0
    %160 = vmatpush1.bf16.msra.mxu0 0
    %161 = vmatprep.subr.bf16.mxu0 0
    %162 = vmatpush1.bf16.msra.mxu0 0
    %163 = vmatprep.mubr.bf16.mxu0 0
    %164 = vmatmul.mubr.bf16.gmra.mrb[0].mxu0 %v119
    %v165 = vpop.f32.mrb[0].mxu0
    %v166 = vadd.f32 0.0, %v165
    %v167 = vpop.f32.mrb[0].mxu0
    %v168 = vadd.f32 0.0, %v167
    %v169 = vpop.f32.mrb[0].mxu0
    %v170 = vadd.f32 0.0, %v169
    %v171 = vpop.f32.mrb[0].mxu0
    %v172 = vadd.f32 0.0, %v171
    %173 = vmatprep.mubr.bf16.mxu0 0
    %174 = vmatmul.mubr.bf16.gmra.mrb[0].mxu0 %v122
    %v175 = vpop.f32.mrb[0].mxu0
    %v176 = vadd.f32 0.0, %v175
    %v177 = vpop.f32.mrb[0].mxu0
    %v178 = vadd.f32 0.0, %v177
    %v179 = vpop.f32.mrb[0].mxu0
    %v180 = vadd.f32 0.0, %v179
    %v181 = vpop.f32.mrb[0].mxu0
    %v182 = vadd.f32 0.0, %v181
    %183 = vdwg.mxu0
    %v184 = vadd.s32 %v48, 128
    %v185 = vand.u32 %v48, 63
    %v186 = vand.u32 %v184, 63
    %vm187 = vcmp.lt.s32.totalorder %v185, 32
    %vm188 = vcmp.lt.s32.totalorder %v186, 32
    %v189 = vld [vmem:[%s3] sm:$0xff]
    %v190 = vld [vmem:[%s3 + $0x8] sm:$0xff]
    %v191 = vld [vmem:[%s3 + $0x10] sm:$0xff]
    %v192 = vld [vmem:[%s3 + $0x18] sm:$0xff]
    %v193 = vld [vmem:[%s3 + $0x20] sm:$0xff]
    %v194 = vld [vmem:[%s3 + $0x28] sm:$0xff]
    %v195 = vld [vmem:[%s3 + $0x30] sm:$0xff]
    %v196 = vld [vmem:[%s3 + $0x38] sm:$0xff]
    %v199 = vrot.slane %v180, 4
    %v200 = vrot.slane %v182, 4
    %v203 = vsel %vm187, %v166, %v199
    %v204 = vsel %vm188, %v168, %v200
    %v213 = vunpack.c.l.b16 %v189
    %v214 = vunpack.c.h.b16 %v189
    %v215 = vunpack.c.l.b16 %v190
    %v216 = vunpack.c.h.b16 %v190
    %v217 = vunpack.c.l.b16 %v191
    %v218 = vunpack.c.h.b16 %v191
    %v219 = vunpack.c.l.b16 %v192
    %v220 = vunpack.c.h.b16 %v192
    %v221 = vunpack.c.l.b16 %v193
    %v222 = vunpack.c.h.b16 %v193
    %v223 = vunpack.c.l.b16 %v194
    %v224 = vunpack.c.h.b16 %v194
    %v225 = vunpack.c.l.b16 %v195
    %v226 = vunpack.c.h.b16 %v195
    %v227 = vunpack.c.l.b16 %v196
    %v228 = vunpack.c.h.b16 %v196
    %v229 = vpack.c.b16 %v215, %v213
    %v230 = vpack.c.b16 %v216, %v214
    %v231 = vpack.c.b16 %v219, %v217
    %v232 = vpack.c.b16 %v220, %v218
    %v233 = vpack.c.b16 %v223, %v221
    %v234 = vpack.c.b16 %v224, %v222
    %v235 = vpack.c.b16 %v227, %v225
    %v236 = vpack.c.b16 %v228, %v226
    %vm245 = vcmask 523264
    %v247 = vsel %vm245, 0, 0
    %249 = vmatprep.subr.bf16.mxu0 %v230
    %250 = vmatpush1.bf16.msra.mxu0 %v229
    %251 = vmatprep.subr.bf16.mxu0 %v232
    %252 = vmatpush1.bf16.msra.mxu0 %v231
    %253 = vmatprep.subr.bf16.mxu0 %v234
    %254 = vmatpush1.bf16.msra.mxu0 %v233
    %255 = vmatprep.subr.bf16.mxu0 %v236
    %256 = vmatpush1.bf16.msra.mxu0 %v235
    %257 = vmatprep.subr.bf16.mxu0 0
    %258 = vmatpush1.bf16.msra.mxu0 0
    %259 = vmatprep.subr.bf16.mxu0 0
    %260 = vmatpush1.bf16.msra.mxu0 0
    %261 = vmatprep.subr.bf16.mxu0 0
    %262 = vmatpush1.bf16.msra.mxu0 0
    %263 = vmatprep.subr.bf16.mxu0 0
    %264 = vmatpush1.bf16.msra.mxu0 0
    %265 = vmatprep.subr.bf16.mxu0 0
    %266 = vmatpush1.bf16.msra.mxu0 0
    %267 = vmatprep.subr.bf16.mxu0 0
    %268 = vmatpush1.bf16.msra.mxu0 0
    %269 = vmatprep.subr.bf16.mxu0 0
    %270 = vmatpush1.bf16.msra.mxu0 0
    %271 = vmatprep.subr.bf16.mxu0 0
    %272 = vmatpush1.bf16.msra.mxu0 0
    %273 = vmatprep.subr.bf16.mxu0 0
    %274 = vmatpush1.bf16.msra.mxu0 0
    %275 = vmatprep.subr.bf16.mxu0 0
    %276 = vmatpush1.bf16.msra.mxu0 0
    %277 = vmatprep.subr.bf16.mxu0 0
    %278 = vmatpush1.bf16.msra.mxu0 0
    %279 = vmatprep.subr.bf16.mxu0 0
    %280 = vmatpush1.bf16.msra.mxu0 0
    %281 = vmatprep.mubr.bf16.mxu0 0
    %282 = vmatmul.mubr.bf16.gmra.mrb[0].mxu0 %v247
    %v283 = vpop.f32.mrb[0].mxu0
    %v284 = vadd.f32 0.0, %v283
    %v285 = vpop.f32.mrb[0].mxu0
    %v286 = vadd.f32 0.0, %v285
    %v287 = vpop.f32.mrb[0].mxu0
    %v288 = vpop.f32.mrb[0].mxu0
    %289 = vdwg.mxu0
    %v290 = vadd.f32 %v203, %v284
    %v291 = vadd.f32 %v204, %v286
    %v292 = vxor.u32 %v290, 2147483648
    %v293 = vxor.u32 %v291, 2147483648
    %v294 = vmul.f32 %v292, 1.442695
    %v295 = vpow.pop %v294
    %v296 = vmul.f32 %v293, 1.442695
    %v297 = vpow.pop %v296
    %v298 = vadd.f32 %v295, 1.0
    %v299 = vadd.f32 %v297, 1.0
    %v300 = vrcp.pop %v298
    %v301 = vmul.f32 1.0, %v300
    %v302 = vrcp.pop %v299
    %v303 = vmul.f32 1.0, %v302
    %v304 = vtanh.pop %v291
    %v305 = vmul.f32 %v301, 0.0
    %v306 = vmul.f32 %v301, %v304
    %308 = vrot.lane.b32.xlu0 %v306, 64
    %v309 = vpop.permute.xlu0 %308
    %v311 = vadd.f32 %v305, %v309
    %v312 = vtanh.pop %v311
    %v313 = vmul.f32 %v303, %v312
    %v314 = vpack.c.bf16 %v313, %v313
    %316 = vrot.lane.b32.xlu0 %v314, 64
    %v317 = vpop.permute.xlu0 %316
    %v319 = vsel %vm245, %v317, 0
    %321 = vmatprep.subr.bf16.mxu0 %v230
    %322 = vmatpush1.bf16.msra.mxu0 %v229
    %323 = vmatprep.subr.bf16.mxu0 %v232
    %324 = vmatpush1.bf16.msra.mxu0 %v231
    %325 = vmatprep.subr.bf16.mxu0 %v234
    %326 = vmatpush1.bf16.msra.mxu0 %v233
    %327 = vmatprep.subr.bf16.mxu0 %v236
    %328 = vmatpush1.bf16.msra.mxu0 %v235
    %329 = vmatprep.subr.bf16.mxu0 0
    %330 = vmatpush1.bf16.msra.mxu0 0
    %331 = vmatprep.subr.bf16.mxu0 0
    %332 = vmatpush1.bf16.msra.mxu0 0
    %333 = vmatprep.subr.bf16.mxu0 0
    %334 = vmatpush1.bf16.msra.mxu0 0
    %335 = vmatprep.subr.bf16.mxu0 0
    %336 = vmatpush1.bf16.msra.mxu0 0
    %337 = vmatprep.subr.bf16.mxu0 0
    %338 = vmatpush1.bf16.msra.mxu0 0
    %339 = vmatprep.subr.bf16.mxu0 0
    %340 = vmatpush1.bf16.msra.mxu0 0
    %341 = vmatprep.subr.bf16.mxu0 0
    %342 = vmatpush1.bf16.msra.mxu0 0
    %343 = vmatprep.subr.bf16.mxu0 0
    %344 = vmatpush1.bf16.msra.mxu0 0
    %345 = vmatprep.subr.bf16.mxu0 0
    %346 = vmatpush1.bf16.msra.mxu0 0
    %347 = vmatprep.subr.bf16.mxu0 0
    %348 = vmatpush1.bf16.msra.mxu0 0
    %349 = vmatprep.subr.bf16.mxu0 0
    %350 = vmatpush1.bf16.msra.mxu0 0
    %351 = vmatprep.subr.bf16.mxu0 0
    %352 = vmatpush1.bf16.msra.mxu0 0
    %353 = vmatprep.mubr.bf16.mxu0 0
    %354 = vmatmul.mubr.bf16.gmra.mrb[0].mxu0 %v319
    %v355 = vpop.f32.mrb[0].mxu0
    %v356 = vadd.f32 0.0, %v355
    %v357 = vpop.f32.mrb[0].mxu0
    %v358 = vadd.f32 0.0, %v357
    %v359 = vpop.f32.mrb[0].mxu0
    %v360 = vpop.f32.mrb[0].mxu0
    %361 = vdwg.mxu0
    %v364 = vrot.slane %v356, 4
    %v365 = vrot.slane %v358, 4
    %v368 = vadd.f32 %v203, %v364
    %v369 = vadd.f32 %v204, %v365
    %v370 = vxor.u32 %v368, 2147483648
    %v371 = vxor.u32 %v369, 2147483648
    %v372 = vmul.f32 %v370, 1.442695
    %v373 = vpow.pop %v372
    %v374 = vmul.f32 %v371, 1.442695
    %v375 = vpow.pop %v374
    %v376 = vadd.f32 %v373, 1.0
    %v377 = vadd.f32 %v375, 1.0
    %v378 = vrcp.pop %v376
    %v379 = vmul.f32 1.0, %v378
    %v380 = vrcp.pop %v377
    %v381 = vmul.f32 1.0, %v380
    %v382 = vtanh.pop %v369
    %v384 = vrot.slane %v311, 4
    %v386 = vmul.f32 %v379, %v384
    %v387 = vmul.f32 %v379, %v382
    %389 = vrot.lane.b32.xlu0 %v387, 64
    %v390 = vpop.permute.xlu0 %389
    %v392 = vadd.f32 %v386, %v390
    %v393 = vtanh.pop %v392
    %v394 = vmul.f32 %v381, %v393
    %v397 = vrot.slane %v176, 4
    %v398 = vrot.slane %v178, 4
    %v401 = vsel %vm187, %v170, %v397
    %v402 = vsel %vm188, %v172, %v398
    %v403 = vpack.c.bf16 %v394, %v394
    %v405 = vrot.slane %v403, 2
    %406 = vrot.lane.b32.xlu0 %v405, 64
    %v407 = vpop.permute.xlu0 %406
    %v409 = vsel %vm245, %v407, 0
    %411 = vmatprep.subr.bf16.mxu0 %v230
    %412 = vmatpush1.bf16.msra.mxu0 %v229
    %413 = vmatprep.subr.bf16.mxu0 %v232
    %414 = vmatpush1.bf16.msra.mxu0 %v231
    %415 = vmatprep.subr.bf16.mxu0 %v234
    %416 = vmatpush1.bf16.msra.mxu0 %v233
    %417 = vmatprep.subr.bf16.mxu0 %v236
    %418 = vmatpush1.bf16.msra.mxu0 %v235
    %419 = vmatprep.subr.bf16.mxu0 0
    %420 = vmatpush1.bf16.msra.mxu0 0
    %421 = vmatprep.subr.bf16.mxu0 0
    %422 = vmatpush1.bf16.msra.mxu0 0
    %423 = vmatprep.subr.bf16.mxu0 0
    %424 = vmatpush1.bf16.msra.mxu0 0
    %425 = vmatprep.subr.bf16.mxu0 0
    %426 = vmatpush1.bf16.msra.mxu0 0
    %427 = vmatprep.subr.bf16.mxu0 0
    %428 = vmatpush1.bf16.msra.mxu0 0
    %429 = vmatprep.subr.bf16.mxu0 0
    %430 = vmatpush1.bf16.msra.mxu0 0
    %431 = vmatprep.subr.bf16.mxu0 0
    %432 = vmatpush1.bf16.msra.mxu0 0
    %433 = vmatprep.subr.bf16.mxu0 0
    %434 = vmatpush1.bf16.msra.mxu0 0
    %435 = vmatprep.subr.bf16.mxu0 0
    %436 = vmatpush1.bf16.msra.mxu0 0
    %437 = vmatprep.subr.bf16.mxu0 0
    %438 = vmatpush1.bf16.msra.mxu0 0
    %439 = vmatprep.subr.bf16.mxu0 0
    %440 = vmatpush1.bf16.msra.mxu0 0
    %441 = vmatprep.subr.bf16.mxu0 0
    %442 = vmatpush1.bf16.msra.mxu0 0
    %443 = vmatprep.mubr.bf16.mxu0 0
    %444 = vmatmul.mubr.bf16.gmra.mrb[0].mxu0 %v409
    %v445 = vpop.f32.mrb[0].mxu0
    %v446 = vadd.f32 0.0, %v445
    %v447 = vpop.f32.mrb[0].mxu0
    %v448 = vadd.f32 0.0, %v447
    %v449 = vpop.f32.mrb[0].mxu0
    %v450 = vpop.f32.mrb[0].mxu0
    %451 = vdwg.mxu0
    %v452 = vadd.f32 %v401, %v446
    %v453 = vadd.f32 %v402, %v448
    %v454 = vxor.u32 %v452, 2147483648
    %v455 = vxor.u32 %v453, 2147483648
    %v456 = vmul.f32 %v454, 1.442695
    %v457 = vpow.pop %v456
    %v458 = vmul.f32 %v455, 1.442695
    %v459 = vpow.pop %v458
    %v460 = vadd.f32 %v457, 1.0
    %v461 = vadd.f32 %v459, 1.0
    %v462 = vrcp.pop %v460
    %v463 = vmul.f32 1.0, %v462
    %v464 = vrcp.pop %v461
    %v465 = vmul.f32 1.0, %v464
    %v466 = vtanh.pop %v453
    %v468 = vrot.slane %v392, 4
    %v470 = vmul.f32 %v463, %v468
    %v471 = vmul.f32 %v463, %v466
    %473 = vrot.lane.b32.xlu0 %v471, 64
    %v474 = vpop.permute.xlu0 %473
    %v476 = vadd.f32 %v470, %v474
    %v477 = vtanh.pop %v476
    %v478 = vmul.f32 %v465, %v477
    %v479 = vpack.c.bf16 %v478, %v478
    %481 = vrot.lane.b32.xlu0 %v479, 64
    %v482 = vpop.permute.xlu0 %481
    %v484 = vsel %vm245, %v482, 0
    %486 = vmatprep.subr.bf16.mxu0 %v230
    %487 = vmatpush1.bf16.msra.mxu0 %v229
    %488 = vmatprep.subr.bf16.mxu0 %v232
    %489 = vmatpush1.bf16.msra.mxu0 %v231
    %490 = vmatprep.subr.bf16.mxu0 %v234
    %491 = vmatpush1.bf16.msra.mxu0 %v233
    %492 = vmatprep.subr.bf16.mxu0 %v236
    %493 = vmatpush1.bf16.msra.mxu0 %v235
    %494 = vmatprep.subr.bf16.mxu0 0
    %495 = vmatpush1.bf16.msra.mxu0 0
    %496 = vmatprep.subr.bf16.mxu0 0
    %497 = vmatpush1.bf16.msra.mxu0 0
    %498 = vmatprep.subr.bf16.mxu0 0
    %499 = vmatpush1.bf16.msra.mxu0 0
    %500 = vmatprep.subr.bf16.mxu0 0
    %501 = vmatpush1.bf16.msra.mxu0 0
    %502 = vmatprep.subr.bf16.mxu0 0
    %503 = vmatpush1.bf16.msra.mxu0 0
    %504 = vmatprep.subr.bf16.mxu0 0
    %505 = vmatpush1.bf16.msra.mxu0 0
    %506 = vmatprep.subr.bf16.mxu0 0
    %507 = vmatpush1.bf16.msra.mxu0 0
    %508 = vmatprep.subr.bf16.mxu0 0
    %509 = vmatpush1.bf16.msra.mxu0 0
    %510 = vmatprep.subr.bf16.mxu0 0
    %511 = vmatpush1.bf16.msra.mxu0 0
    %512 = vmatprep.subr.bf16.mxu0 0
    %513 = vmatpush1.bf16.msra.mxu0 0
    %514 = vmatprep.subr.bf16.mxu0 0
    %515 = vmatpush1.bf16.msra.mxu0 0
    %516 = vmatprep.subr.bf16.mxu0 0
    %517 = vmatpush1.bf16.msra.mxu0 0
    %518 = vmatprep.mubr.bf16.mxu0 0
    %519 = vmatmul.mubr.bf16.gmra.mrb[0].mxu0 %v484
    %v520 = vpop.f32.mrb[0].mxu0
    %v521 = vadd.f32 0.0, %v520
    %v522 = vpop.f32.mrb[0].mxu0
    %v523 = vadd.f32 0.0, %v522
    %v524 = vpop.f32.mrb[0].mxu0
    %v525 = vpop.f32.mrb[0].mxu0
    %526 = vdwg.mxu0
    %v529 = vrot.slane %v521, 4
    %v530 = vrot.slane %v523, 4
    %v533 = vadd.f32 %v401, %v529
    %v534 = vadd.f32 %v402, %v530
    %v535 = vxor.u32 %v533, 2147483648
    %v536 = vxor.u32 %v534, 2147483648
    %v537 = vmul.f32 %v535, 1.442695
    %v538 = vpow.pop %v537
    %v539 = vmul.f32 %v536, 1.442695
    %v540 = vpow.pop %v539
    %v541 = vadd.f32 %v538, 1.0
    %v542 = vadd.f32 %v540, 1.0
    %v543 = vrcp.pop %v541
    %v544 = vmul.f32 1.0, %v543
    %v545 = vrcp.pop %v542
    %v546 = vmul.f32 1.0, %v545
    %v547 = vtanh.pop %v534
    %v549 = vrot.slane %v476, 4
    %v551 = vmul.f32 %v544, %v549
    %v552 = vmul.f32 %v544, %v547
    %554 = vrot.lane.b32.xlu0 %v552, 64
    %v555 = vpop.permute.xlu0 %554
    %v557 = vadd.f32 %v551, %v555
    %v558 = vtanh.pop %v557
    %v559 = vmul.f32 %v546, %v558
    %v562 = vrot.slane %v170, 4
    %v563 = vrot.slane %v172, 4
    %v566 = vsel %vm187, %v176, %v562
    %v567 = vsel %vm188, %v178, %v563
    %v568 = vpack.c.bf16 %v559, %v559
    %v570 = vrot.slane %v568, 2
    %571 = vrot.lane.b32.xlu0 %v570, 64
    %v572 = vpop.permute.xlu0 %571
    %v574 = vsel %vm245, %v572, 0
    %576 = vmatprep.subr.bf16.mxu0 %v230
    %577 = vmatpush1.bf16.msra.mxu0 %v229
    %578 = vmatprep.subr.bf16.mxu0 %v232
    %579 = vmatpush1.bf16.msra.mxu0 %v231
    %580 = vmatprep.subr.bf16.mxu0 %v234
    %581 = vmatpush1.bf16.msra.mxu0 %v233
    %582 = vmatprep.subr.bf16.mxu0 %v236
    %583 = vmatpush1.bf16.msra.mxu0 %v235
    %584 = vmatprep.subr.bf16.mxu0 0
    %585 = vmatpush1.bf16.msra.mxu0 0
    %586 = vmatprep.subr.bf16.mxu0 0
    %587 = vmatpush1.bf16.msra.mxu0 0
    %588 = vmatprep.subr.bf16.mxu0 0
    %589 = vmatpush1.bf16.msra.mxu0 0
    %590 = vmatprep.subr.bf16.mxu0 0
    %591 = vmatpush1.bf16.msra.mxu0 0
    %592 = vmatprep.subr.bf16.mxu0 0
    %593 = vmatpush1.bf16.msra.mxu0 0
    %594 = vmatprep.subr.bf16.mxu0 0
    %595 = vmatpush1.bf16.msra.mxu0 0
    %596 = vmatprep.subr.bf16.mxu0 0
    %597 = vmatpush1.bf16.msra.mxu0 0
    %598 = vmatprep.subr.bf16.mxu0 0
    %599 = vmatpush1.bf16.msra.mxu0 0
    %600 = vmatprep.subr.bf16.mxu0 0
    %601 = vmatpush1.bf16.msra.mxu0 0
    %602 = vmatprep.subr.bf16.mxu0 0
    %603 = vmatpush1.bf16.msra.mxu0 0
    %604 = vmatprep.subr.bf16.mxu0 0
    %605 = vmatpush1.bf16.msra.mxu0 0
    %606 = vmatprep.subr.bf16.mxu0 0
    %607 = vmatpush1.bf16.msra.mxu0 0
    %608 = vmatprep.mubr.bf16.mxu0 0
    %609 = vmatmul.mubr.bf16.gmra.mrb[0].mxu0 %v574
    %v610 = vpop.f32.mrb[0].mxu0
    %v611 = vadd.f32 0.0, %v610
    %v612 = vpop.f32.mrb[0].mxu0
    %v613 = vadd.f32 0.0, %v612
    %v614 = vpop.f32.mrb[0].mxu0
    %v615 = vpop.f32.mrb[0].mxu0
    %616 = vdwg.mxu0
    %v617 = vadd.f32 %v566, %v611
    %v618 = vadd.f32 %v567, %v613
    %v619 = vxor.u32 %v617, 2147483648
    %v620 = vxor.u32 %v618, 2147483648
    %v621 = vmul.f32 %v619, 1.442695
    %v622 = vpow.pop %v621
    %v623 = vmul.f32 %v620, 1.442695
    %v624 = vpow.pop %v623
    %v625 = vadd.f32 %v622, 1.0
    %v626 = vadd.f32 %v624, 1.0
    %v627 = vrcp.pop %v625
    %v628 = vmul.f32 1.0, %v627
    %v629 = vrcp.pop %v626
    %v630 = vmul.f32 1.0, %v629
    %v631 = vtanh.pop %v618
    %v633 = vrot.slane %v557, 4
    %v635 = vmul.f32 %v628, %v633
    %v636 = vmul.f32 %v628, %v631
    %638 = vrot.lane.b32.xlu0 %v636, 64
    %v639 = vpop.permute.xlu0 %638
    %v641 = vadd.f32 %v635, %v639
    %v642 = vtanh.pop %v641
    %v643 = vmul.f32 %v630, %v642
    %v644 = vpack.c.bf16 %v643, %v643
    %646 = vrot.lane.b32.xlu0 %v644, 64
    %v647 = vpop.permute.xlu0 %646
    %v649 = vsel %vm245, %v647, 0
    %651 = vmatprep.subr.bf16.mxu0 %v230
    %652 = vmatpush1.bf16.msra.mxu0 %v229
    %653 = vmatprep.subr.bf16.mxu0 %v232
    %654 = vmatpush1.bf16.msra.mxu0 %v231
    %655 = vmatprep.subr.bf16.mxu0 %v234
    %656 = vmatpush1.bf16.msra.mxu0 %v233
    %657 = vmatprep.subr.bf16.mxu0 %v236
    %658 = vmatpush1.bf16.msra.mxu0 %v235
    %659 = vmatprep.subr.bf16.mxu0 0
    %660 = vmatpush1.bf16.msra.mxu0 0
    %661 = vmatprep.subr.bf16.mxu0 0
    %662 = vmatpush1.bf16.msra.mxu0 0
    %663 = vmatprep.subr.bf16.mxu0 0
    %664 = vmatpush1.bf16.msra.mxu0 0
    %665 = vmatprep.subr.bf16.mxu0 0
    %666 = vmatpush1.bf16.msra.mxu0 0
    %667 = vmatprep.subr.bf16.mxu0 0
    %668 = vmatpush1.bf16.msra.mxu0 0
    %669 = vmatprep.subr.bf16.mxu0 0
    %670 = vmatpush1.bf16.msra.mxu0 0
    %671 = vmatprep.subr.bf16.mxu0 0
    %672 = vmatpush1.bf16.msra.mxu0 0
    %673 = vmatprep.subr.bf16.mxu0 0
    %674 = vmatpush1.bf16.msra.mxu0 0
    %675 = vmatprep.subr.bf16.mxu0 0
    %676 = vmatpush1.bf16.msra.mxu0 0
    %677 = vmatprep.subr.bf16.mxu0 0
    %678 = vmatpush1.bf16.msra.mxu0 0
    %679 = vmatprep.subr.bf16.mxu0 0
    %680 = vmatpush1.bf16.msra.mxu0 0
    %681 = vmatprep.subr.bf16.mxu0 0
    %682 = vmatpush1.bf16.msra.mxu0 0
    %683 = vmatprep.mubr.bf16.mxu0 0
    %684 = vmatmul.mubr.bf16.gmra.mrb[0].mxu0 %v649
    %v685 = vpop.f32.mrb[0].mxu0
    %v686 = vadd.f32 0.0, %v685
    %v687 = vpop.f32.mrb[0].mxu0
    %v688 = vadd.f32 0.0, %v687
    %v689 = vpop.f32.mrb[0].mxu0
    %v690 = vpop.f32.mrb[0].mxu0
    %691 = vdwg.mxu0
    %v694 = vrot.slane %v686, 4
    %v695 = vrot.slane %v688, 4
    %v698 = vadd.f32 %v566, %v694
    %v699 = vadd.f32 %v567, %v695
    %v700 = vxor.u32 %v698, 2147483648
    %v701 = vxor.u32 %v699, 2147483648
    %v702 = vmul.f32 %v700, 1.442695
    %v703 = vpow.pop %v702
    %v704 = vmul.f32 %v701, 1.442695
    %v705 = vpow.pop %v704
    %v706 = vadd.f32 %v703, 1.0
    %v707 = vadd.f32 %v705, 1.0
    %v708 = vrcp.pop %v706
    %v709 = vmul.f32 1.0, %v708
    %v710 = vrcp.pop %v707
    %v711 = vmul.f32 1.0, %v710
    %v712 = vtanh.pop %v699
    %v714 = vrot.slane %v641, 4
    %v716 = vmul.f32 %v709, %v714
    %v717 = vmul.f32 %v709, %v712
    %719 = vrot.lane.b32.xlu0 %v717, 64
    %v720 = vpop.permute.xlu0 %719
    %v722 = vadd.f32 %v716, %v720
    %v723 = vtanh.pop %v722
    %v724 = vmul.f32 %v711, %v723
    %v727 = vrot.slane %v166, 4
    %v728 = vrot.slane %v168, 4
    %v731 = vsel %vm187, %v180, %v727
    %v732 = vsel %vm188, %v182, %v728
    %v733 = vpack.c.bf16 %v724, %v724
    %v735 = vrot.slane %v733, 2
    %736 = vrot.lane.b32.xlu0 %v735, 64
    %v737 = vpop.permute.xlu0 %736
    %v739 = vsel %vm245, %v737, 0
    %741 = vmatprep.subr.bf16.mxu0 %v230
    %742 = vmatpush1.bf16.msra.mxu0 %v229
    %743 = vmatprep.subr.bf16.mxu0 %v232
    %744 = vmatpush1.bf16.msra.mxu0 %v231
    %745 = vmatprep.subr.bf16.mxu0 %v234
    %746 = vmatpush1.bf16.msra.mxu0 %v233
    %747 = vmatprep.subr.bf16.mxu0 %v236
    %748 = vmatpush1.bf16.msra.mxu0 %v235
    %749 = vmatprep.subr.bf16.mxu0 0
    %750 = vmatpush1.bf16.msra.mxu0 0
    %751 = vmatprep.subr.bf16.mxu0 0
    %752 = vmatpush1.bf16.msra.mxu0 0
    %753 = vmatprep.subr.bf16.mxu0 0
    %754 = vmatpush1.bf16.msra.mxu0 0
    %755 = vmatprep.subr.bf16.mxu0 0
    %756 = vmatpush1.bf16.msra.mxu0 0
    %757 = vmatprep.subr.bf16.mxu0 0
    %758 = vmatpush1.bf16.msra.mxu0 0
    %759 = vmatprep.subr.bf16.mxu0 0
    %760 = vmatpush1.bf16.msra.mxu0 0
    %761 = vmatprep.subr.bf16.mxu0 0
    %762 = vmatpush1.bf16.msra.mxu0 0
    %763 = vmatprep.subr.bf16.mxu0 0
    %764 = vmatpush1.bf16.msra.mxu0 0
    %765 = vmatprep.subr.bf16.mxu0 0
    %766 = vmatpush1.bf16.msra.mxu0 0
    %767 = vmatprep.subr.bf16.mxu0 0
    %768 = vmatpush1.bf16.msra.mxu0 0
    %769 = vmatprep.subr.bf16.mxu0 0
    %770 = vmatpush1.bf16.msra.mxu0 0
    %771 = vmatprep.subr.bf16.mxu0 0
    %772 = vmatpush1.bf16.msra.mxu0 0
    %773 = vmatprep.mubr.bf16.mxu0 0
    %774 = vmatmul.mubr.bf16.gmra.mrb[0].mxu0 %v739
    %v775 = vpop.f32.mrb[0].mxu0
    %v776 = vadd.f32 0.0, %v775
    %v777 = vpop.f32.mrb[0].mxu0
    %v778 = vadd.f32 0.0, %v777
    %v779 = vpop.f32.mrb[0].mxu0
    %v780 = vpop.f32.mrb[0].mxu0
    %781 = vdwg.mxu0
    %v782 = vadd.f32 %v731, %v776
    %v783 = vadd.f32 %v732, %v778
    %v784 = vxor.u32 %v782, 2147483648
    %v785 = vxor.u32 %v783, 2147483648
    %v786 = vmul.f32 %v784, 1.442695
    %v787 = vpow.pop %v786
    %v788 = vmul.f32 %v785, 1.442695
    %v789 = vpow.pop %v788
    %v790 = vadd.f32 %v787, 1.0
    %v791 = vadd.f32 %v789, 1.0
    %v792 = vrcp.pop %v790
    %v793 = vmul.f32 1.0, %v792
    %v794 = vrcp.pop %v791
    %v795 = vmul.f32 1.0, %v794
    %v796 = vtanh.pop %v783
    %v798 = vrot.slane %v722, 4
    %v800 = vmul.f32 %v793, %v798
    %v801 = vmul.f32 %v793, %v796
    %803 = vrot.lane.b32.xlu0 %v801, 64
    %v804 = vpop.permute.xlu0 %803
    %v806 = vadd.f32 %v800, %v804
    %v807 = vtanh.pop %v806
    %v808 = vmul.f32 %v795, %v807
    %v809 = vpack.c.bf16 %v808, %v808
    %811 = vrot.lane.b32.xlu0 %v809, 64
    %v812 = vpop.permute.xlu0 %811
    %v814 = vsel %vm245, %v812, 0
    %816 = vmatprep.subr.bf16.mxu0 %v230
    %817 = vmatpush1.bf16.msra.mxu0 %v229
    %818 = vmatprep.subr.bf16.mxu0 %v232
    %819 = vmatpush1.bf16.msra.mxu0 %v231
    %820 = vmatprep.subr.bf16.mxu0 %v234
    %821 = vmatpush1.bf16.msra.mxu0 %v233
    %822 = vmatprep.subr.bf16.mxu0 %v236
    %823 = vmatpush1.bf16.msra.mxu0 %v235
    %824 = vmatprep.subr.bf16.mxu0 0
    %825 = vmatpush1.bf16.msra.mxu0 0
    %826 = vmatprep.subr.bf16.mxu0 0
    %827 = vmatpush1.bf16.msra.mxu0 0
    %828 = vmatprep.subr.bf16.mxu0 0
    %829 = vmatpush1.bf16.msra.mxu0 0
    %830 = vmatprep.subr.bf16.mxu0 0
    %831 = vmatpush1.bf16.msra.mxu0 0
    %832 = vmatprep.subr.bf16.mxu0 0
    %833 = vmatpush1.bf16.msra.mxu0 0
    %834 = vmatprep.subr.bf16.mxu0 0
    %835 = vmatpush1.bf16.msra.mxu0 0
    %836 = vmatprep.subr.bf16.mxu0 0
    %837 = vmatpush1.bf16.msra.mxu0 0
    %838 = vmatprep.subr.bf16.mxu0 0
    %839 = vmatpush1.bf16.msra.mxu0 0
    %840 = vmatprep.subr.bf16.mxu0 0
    %841 = vmatpush1.bf16.msra.mxu0 0
    %842 = vmatprep.subr.bf16.mxu0 0
    %843 = vmatpush1.bf16.msra.mxu0 0
    %844 = vmatprep.subr.bf16.mxu0 0
    %845 = vmatpush1.bf16.msra.mxu0 0
    %846 = vmatprep.subr.bf16.mxu0 0
    %847 = vmatpush1.bf16.msra.mxu0 0
    %848 = vmatprep.mubr.bf16.mxu0 0
    %849 = vmatmul.mubr.bf16.gmra.mrb[0].mxu0 %v814
    %v850 = vpop.f32.mrb[0].mxu0
    %v851 = vadd.f32 0.0, %v850
    %v852 = vpop.f32.mrb[0].mxu0
    %v853 = vadd.f32 0.0, %v852
    %v854 = vpop.f32.mrb[0].mxu0
    %v855 = vpop.f32.mrb[0].mxu0
    %856 = vdwg.mxu0
    %v859 = vrot.slane %v851, 4
    %v860 = vrot.slane %v853, 4
    %v863 = vadd.f32 %v731, %v859
    %v864 = vadd.f32 %v732, %v860
    %v865 = vxor.u32 %v863, 2147483648
    %v866 = vxor.u32 %v864, 2147483648
    %v867 = vmul.f32 %v865, 1.442695
    %v868 = vpow.pop %v867
    %v869 = vmul.f32 %v866, 1.442695
    %v870 = vpow.pop %v869
    %v871 = vadd.f32 %v868, 1.0
    %v872 = vadd.f32 %v870, 1.0
    %v873 = vrcp.pop %v871
    %v874 = vmul.f32 1.0, %v873
    %v875 = vrcp.pop %v872
    %v876 = vmul.f32 1.0, %v875
    %v877 = vtanh.pop %v864
    %v879 = vrot.slane %v806, 4
    %v881 = vmul.f32 %v874, %v879
    %v882 = vmul.f32 %v874, %v877
    %884 = vrot.lane.b32.xlu0 %v882, 64
    %v885 = vpop.permute.xlu0 %884
    %v887 = vadd.f32 %v881, %v885
    %v888 = vtanh.pop %v887
    %v889 = vmul.f32 %v876, %v888
    %891 = vrot.lane.b32.xlu0 %v313, 64
    %v892 = vpop.permute.xlu0 %891
    %v895 = vrot.slane %v889, 4
    %896 = vrot.lane.b32.xlu0 %v895, 64
    %v897 = vpop.permute.xlu0 %896
    %vm899 = vcmask 261120
    %v900 = vsel %vm899, %v892, %v897
    %v902 = vrot.slane %v900, 2
    %v904 = vmul.f32 %v900, %v902
    %v905 = vsub.f32 %v900, %v902
    %v906 = vand.u32 2147483647, %v905
    %908 = vrot.lane.b32.xlu0 %v906, 64
    %v909 = vpop.permute.xlu0 %908
    %v911 = vsel %vm245, %v904, %v909
    %913 = vrot.lane.b32.xlu0 %v394, 64
    %v914 = vpop.permute.xlu0 %913
    %v917 = vrot.slane %v808, 4
    %918 = vrot.lane.b32.xlu0 %v917, 64
    %v919 = vpop.permute.xlu0 %918
    %v921 = vsel %vm899, %v914, %v919
    %v923 = vrot.slane %v921, 2
    %v925 = vmul.f32 %v921, %v923
    %v926 = vsub.f32 %v921, %v923
    %v927 = vand.u32 2147483647, %v926
    %929 = vrot.lane.b32.xlu0 %v927, 64
    %v930 = vpop.permute.xlu0 %929
    %v932 = vsel %vm245, %v925, %v930
    %934 = vrot.lane.b32.xlu0 %v478, 64
    %v935 = vpop.permute.xlu0 %934
    %v938 = vrot.slane %v724, 4
    %939 = vrot.lane.b32.xlu0 %v938, 64
    %v940 = vpop.permute.xlu0 %939
    %v942 = vsel %vm899, %v935, %v940
    %v944 = vrot.slane %v942, 2
    %v946 = vmul.f32 %v942, %v944
    %v947 = vsub.f32 %v942, %v944
    %v948 = vand.u32 2147483647, %v947
    %950 = vrot.lane.b32.xlu0 %v948, 64
    %v951 = vpop.permute.xlu0 %950
    %v953 = vsel %vm245, %v946, %v951
    %955 = vrot.lane.b32.xlu0 %v559, 64
    %v956 = vpop.permute.xlu0 %955
    %v959 = vrot.slane %v643, 4
    %960 = vrot.lane.b32.xlu0 %v959, 64
    %v961 = vpop.permute.xlu0 %960
    %v963 = vsel %vm899, %v956, %v961
    %v965 = vrot.slane %v963, 2
    %v967 = vmul.f32 %v963, %v965
    %v968 = vsub.f32 %v963, %v965
    %v969 = vand.u32 2147483647, %v968
    %971 = vrot.lane.b32.xlu0 %v969, 64
    %v972 = vpop.permute.xlu0 %971
    %v974 = vsel %vm245, %v967, %v972
    %975 = vrot.lane.b32.xlu0 %v643, 64
    %v976 = vpop.permute.xlu0 %975
    %v978 = vrot.slane %v559, 4
    %979 = vrot.lane.b32.xlu0 %v978, 64
    %v980 = vpop.permute.xlu0 %979
    %v982 = vsel %vm899, %v976, %v980
    %v984 = vrot.slane %v982, 2
    %v986 = vmul.f32 %v982, %v984
    %v987 = vsub.f32 %v982, %v984
    %v988 = vand.u32 2147483647, %v987
    %990 = vrot.lane.b32.xlu0 %v988, 64
    %v991 = vpop.permute.xlu0 %990
    %v993 = vsel %vm245, %v986, %v991
    %994 = vrot.lane.b32.xlu0 %v724, 64
    %v995 = vpop.permute.xlu0 %994
    %v997 = vrot.slane %v478, 4
    %998 = vrot.lane.b32.xlu0 %v997, 64
    %v999 = vpop.permute.xlu0 %998
    %v1001 = vsel %vm899, %v995, %v999
    %v1003 = vrot.slane %v1001, 2
    %v1005 = vmul.f32 %v1001, %v1003
    %v1006 = vsub.f32 %v1001, %v1003
    %v1007 = vand.u32 2147483647, %v1006
    %1009 = vrot.lane.b32.xlu0 %v1007, 64
    %v1010 = vpop.permute.xlu0 %1009
    %v1012 = vsel %vm245, %v1005, %v1010
    %1013 = vrot.lane.b32.xlu0 %v808, 64
    %v1014 = vpop.permute.xlu0 %1013
    %v1016 = vrot.slane %v394, 4
    %1017 = vrot.lane.b32.xlu0 %v1016, 64
    %v1018 = vpop.permute.xlu0 %1017
    %v1020 = vsel %vm899, %v1014, %v1018
    %v1022 = vrot.slane %v1020, 2
    %v1024 = vmul.f32 %v1020, %v1022
    %v1025 = vsub.f32 %v1020, %v1022
    %v1026 = vand.u32 2147483647, %v1025
    %1028 = vrot.lane.b32.xlu0 %v1026, 64
    %v1029 = vpop.permute.xlu0 %1028
    %v1031 = vsel %vm245, %v1024, %v1029
    %1032 = vrot.lane.b32.xlu0 %v889, 64
    %v1033 = vpop.permute.xlu0 %1032
    %v1035 = vrot.slane %v313, 4
    %1036 = vrot.lane.b32.xlu0 %v1035, 64
    %v1037 = vpop.permute.xlu0 %1036
    %v1039 = vsel %vm899, %v1033, %v1037
    %v1041 = vrot.slane %v1039, 2
    %v1043 = vmul.f32 %v1039, %v1041
    %v1044 = vsub.f32 %v1039, %v1041
    %v1045 = vand.u32 2147483647, %v1044
    %1047 = vrot.lane.b32.xlu0 %v1045, 64
    %v1048 = vpop.permute.xlu0 %1047
    %v1050 = vsel %vm245, %v1043, %v1048
    %v1052 = vrot.slane %v932, 2
    %v1055 = vrot.slane %v953, 4
    %v1058 = vrot.slane %v974, 6
    %v1061 = vrot.slane %v1012, 2
    %v1064 = vrot.slane %v1031, 4
    %v1067 = vrot.slane %v1050, 6
    %v1069 = vsel %vm25, %v911, %v1052
    %v1070 = vsel %vm42, %v1069, %v1055
    %vm1071 = vcmask 1045504
    %v1072 = vsel %vm1071, %v1070, %v1058
    %v1073 = vsel %vm25, %v993, %v1061
    %v1074 = vsel %vm42, %v1073, %v1064
    %v1075 = vsel %vm1071, %v1074, %v1067
    %v1076 = vld [vmem:[%s4] sm:$0xff]
    %v1077 = vld [vmem:[%s4 + $0x8] sm:$0xff]
    %v1078 = vld [vmem:[%s4 + $0x10] sm:$0xff]
    %v1079 = vld [vmem:[%s4 + $0x18] sm:$0xff]
    %v1080 = vld [vmem:[%s4 + $0x20] sm:$0xff]
    %v1081 = vld [vmem:[%s4 + $0x28] sm:$0xff]
    %v1082 = vld [vmem:[%s4 + $0x30] sm:$0xff]
    %v1083 = vld [vmem:[%s4 + $0x38] sm:$0xff]
    %v1084 = vld [vmem:[%s4 + $0x40] sm:$0xff]
    %v1085 = vld [vmem:[%s4 + $0x48] sm:$0xff]
    %v1086 = vld [vmem:[%s4 + $0x50] sm:$0xff]
    %v1087 = vld [vmem:[%s4 + $0x58] sm:$0xff]
    %v1088 = vld [vmem:[%s4 + $0x60] sm:$0xff]
    %v1089 = vld [vmem:[%s4 + $0x68] sm:$0xff]
    %v1090 = vld [vmem:[%s4 + $0x70] sm:$0xff]
    %v1091 = vld [vmem:[%s4 + $0x78] sm:$0xff]
    %v1092 = vld [vmem:[%s4 + $0x80] sm:$0xff]
    %v1093 = vlaneseq
    %v1094 = vshrl.u32 %v1093, 7
    %v1095 = vsub.s32 0, %v1094
    %v1096 = vrot.slane %v1092, %v1095
    %1097 = vmatprep.subr.mxu0 0.0
    %1098 = vmatpush1.msra.mxu0 %v1076
    %1099 = vmatprep.subr.mxu0 0.0
    %1100 = vmatpush1.msra.mxu0 %v1077
    %1101 = vmatprep.subr.mxu0 0.0
    %1102 = vmatpush1.msra.mxu0 %v1078
    %1103 = vmatprep.subr.mxu0 0.0
    %1104 = vmatpush1.msra.mxu0 %v1079
    %1105 = vmatprep.subr.mxu0 0.0
    %1106 = vmatpush1.msra.mxu0 %v1080
    %1107 = vmatprep.subr.mxu0 0.0
    %1108 = vmatpush1.msra.mxu0 %v1081
    %1109 = vmatprep.subr.mxu0 0.0
    %1110 = vmatpush1.msra.mxu0 %v1082
    %1111 = vmatprep.subr.mxu0 0.0
    %1112 = vmatpush1.msra.mxu0 %v1083
    %1113 = vmatprep.subr.mxu0 0.0
    %1114 = vmatpush1.msra.mxu0 %v1084
    %1115 = vmatprep.subr.mxu0 0.0
    %1116 = vmatpush1.msra.mxu0 %v1085
    %1117 = vmatprep.subr.mxu0 0.0
    %1118 = vmatpush1.msra.mxu0 %v1086
    %1119 = vmatprep.subr.mxu0 0.0
    %1120 = vmatpush1.msra.mxu0 %v1087
    %1121 = vmatprep.subr.mxu0 0.0
    %1122 = vmatpush1.msra.mxu0 %v1088
    %1123 = vmatprep.subr.mxu0 0.0
    %1124 = vmatpush1.msra.mxu0 %v1089
    %1125 = vmatprep.subr.mxu0 0.0
    %1126 = vmatpush1.msra.mxu0 %v1090
    %1127 = vmatprep.subr.mxu0 0.0
    %1128 = vmatpush1.msra.mxu0 %v1091
    %1129 = vmatprep.subr.mxu0 0.0
    %1130 = vmatpush1.msra.mxu0 0.0
    %1131 = vmatprep.subr.mxu0 0.0
    %1132 = vmatpush1.msra.mxu0 0.0
    %1133 = vmatprep.subr.mxu0 0.0
    %1134 = vmatpush1.msra.mxu0 0.0
    %1135 = vmatprep.subr.mxu0 0.0
    %1136 = vmatpush1.msra.mxu0 0.0
    %1137 = vmatprep.subr.mxu0 0.0
    %1138 = vmatpush1.msra.mxu0 0.0
    %1139 = vmatprep.subr.mxu0 0.0
    %1140 = vmatpush1.msra.mxu0 0.0
    %1141 = vmatprep.subr.mxu0 0.0
    %1142 = vmatpush1.msra.mxu0 0.0
    %1143 = vmatprep.subr.mxu0 0.0
    %1144 = vmatpush1.msra.mxu0 0.0
    %1145 = vmatprep.subr.mxu0 0.0
    %1146 = vmatpush1.msra.mxu0 0.0
    %1147 = vmatprep.subr.mxu0 0.0
    %1148 = vmatpush1.msra.mxu0 0.0
    %1149 = vmatprep.subr.mxu0 0.0
    %1150 = vmatpush1.msra.mxu0 0.0
    %1151 = vmatprep.subr.mxu0 0.0
    %1152 = vmatpush1.msra.mxu0 0.0
    %1153 = vmatprep.subr.mxu0 0.0
    %1154 = vmatpush1.msra.mxu0 0.0
    %1155 = vmatprep.subr.mxu0 0.0
    %1156 = vmatpush1.msra.mxu0 0.0
    %1157 = vmatprep.subr.mxu0 0.0
    %1158 = vmatpush1.msra.mxu0 0.0
    %1159 = vmatprep.subr.mxu0 0.0
    %1160 = vmatpush1.msra.mxu0 0.0
    %1161 = vmatprep.mubr.f32.mxu0 0.0
    %1162 = vmatmul.mubr.f32.gmra.mrb[0].mxu0 %v1072
    %v1163 = vpop.f32.mrb[0].mxu0
    %v1164 = vadd.f32 %v1096, %v1163
    %v1165 = vpop.f32.mrb[0].mxu0
    %1166 = vmatprep.mubr.f32.mxu0 0.0
    %1167 = vmatmul.mubr.f32.gmra.mrb[0].mxu0 %v1075
    %v1168 = vpop.f32.mrb[0].mxu0
    %v1169 = vadd.f32 %v1096, %v1168
    %v1170 = vpop.f32.mrb[0].mxu0
    %1171 = vdwg.mxu0
    %v1172 = vxor.u32 %v1164, 2147483648
    %v1173 = vxor.u32 %v1169, 2147483648
    %v1174 = vmul.f32 %v1172, 1.442695
    %v1175 = vpow.pop %v1174
    %v1176 = vmul.f32 %v1173, 1.442695
    %v1177 = vpow.pop %v1176
    %v1178 = vadd.f32 %v1175, 1.0
    %v1179 = vadd.f32 %v1177, 1.0
    %v1180 = vrcp.pop %v1178
    %v1181 = vmul.f32 1.0, %v1180
    %v1182 = vrcp.pop %v1179
    %v1183 = vmul.f32 1.0, %v1182
    %v1184 = vlaneseq
    %v1185 = vshrl.u32 %v1184, 7
    %v1186 = vsub.s32 1, %v1185
    %v1187 = vrot.slane %v1092, %v1186
    %v1188 = vmul.f32 %v1181, %v1187
    %v1189 = vmul.f32 %v1183, %v1187
    %v1190 = vsel %vm899, %v1188, 0.0
    %1191 = vadd.xlane.f32.xlu0 %v1190
    %v1192 = vpop.xlane.xlu0 %1191
    %v1193 = vsel %vm899, %v1189, 0.0
    %1194 = vadd.xlane.f32.xlu0 %v1193
    %v1195 = vpop.xlane.xlu0 %1194
    %v1196 = vlaneseq
    %v1197 = vshrl.u32 %v1196, 7
    %v1198 = vsub.s32 2, %v1197
    %v1199 = vrot.slane %v1092, %v1198
    %v1200 = vadd.f32 %v1192, %v1199
    %v1201 = vadd.f32 %v1195, %v1199
    %v1202 = vxor.u32 %v1200, 2147483648
    %v1203 = vxor.u32 %v1201, 2147483648
    %v1204 = vmul.f32 %v1202, 1.442695
    %v1205 = vpow.pop %v1204
    %v1206 = vmul.f32 %v1203, 1.442695
    %v1207 = vpow.pop %v1206
    %v1208 = vadd.f32 %v1205, 1.0
    %v1209 = vadd.f32 %v1207, 1.0
    %v1210 = vrcp.pop %v1208
    %v1211 = vmul.f32 1.0, %v1210
    %v1212 = vrcp.pop %v1209
    %v1213 = vmul.f32 1.0, %v1212
    %v1215 = vrot.slane %v1211, 2
    %1216 = vrot.lane.b32.xlu0 %v1215, 1
    %v1217 = vpop.permute.xlu0 %1216
    %v1219 = vrot.slane %v1211, 4
    %1220 = vrot.lane.b32.xlu0 %v1219, 2
    %v1221 = vpop.permute.xlu0 %1220
    %v1223 = vrot.slane %v1211, 6
    %1224 = vrot.lane.b32.xlu0 %v1223, 3
    %v1225 = vpop.permute.xlu0 %1224
    %1228 = vrot.lane.b32.xlu0 %v1213, 4
    %v1229 = vpop.permute.xlu0 %1228
    %v1231 = vrot.slane %v1213, 2
    %1232 = vrot.lane.b32.xlu0 %v1231, 5
    %v1233 = vpop.permute.xlu0 %1232
    %v1235 = vrot.slane %v1213, 4
    %1236 = vrot.lane.b32.xlu0 %v1235, 6
    %v1237 = vpop.permute.xlu0 %1236
    %v1239 = vrot.slane %v1213, 6
    %1240 = vrot.lane.b32.xlu0 %v1239, 7
    %v1241 = vpop.permute.xlu0 %1240
    %vm1243 = vcmask 7168
    %v1244 = vsel %vm1243, %v1211, %v1217
    %vm1245 = vcmask 15360
    %v1246 = vsel %vm1245, %v1244, %v1221
    %vm1247 = vcmask 23552
    %v1248 = vsel %vm1247, %v1246, %v1225
    %vm1249 = vcmask 31744
    %v1250 = vsel %vm1249, %v1248, %v1229
    %vm1251 = vcmask 39936
    %v1252 = vsel %vm1251, %v1250, %v1233
    %vm1253 = vcmask 48128
    %v1254 = vsel %vm1253, %v1252, %v1237
    %vm1255 = vcmask 56320
    %v1256 = vsel %vm1255, %v1254, %v1241
    %vm1257 = vcmask 58368
    %1258 = vst.msk [vmem:[#allocation2] sm:$0x3] %vm1257, %v1256
    // Predicated region
    $region22: #{similarity_bilstm_forward.1} parent=1 // pred_check
      _
    $region23: #{similarity_bilstm_forward.1} parent=1 // pred_check_branch
      %1260 = sbr.rel (0) target = $region25
    $region24: #{similarity_bilstm_forward.1} parent=1 // pred_region
      %s1262 = ssub.s32 32, 32
      %1263 = vsyncadd [#allocation3], %s1262
      %s1265 = sshll.u32 [#allocation2], 4
      %s1266 = int_to_ptr.vmem [resolvable:$true] %s1265
      %1268 = dma.vmem_to_hbm [thread:$0]  %s1266, 32, %s5, [#allocation3]
    $region25: #{similarity_bilstm_forward.1} parent=1 // pred_fallthru
      _
    // Predicated region
    $region26: #{similarity_bilstm_forward.1} parent=1 // pred_check
      _
    $region27: #{similarity_bilstm_forward.1} parent=1 // pred_check_branch
      %1270 = sbr.rel (0) target = $region29
    $region28: #{similarity_bilstm_forward.1} parent=1 // pred_region
      %1271 = dma.done [#allocation3], 32
    $region29: #{similarity_bilstm_forward.1} parent=1 // pred_fallthru
      _
    %1272 = vsyncpa [#allocation3], 1

</llo_original>
